<compile_context>
chip_gen: v7x
topology: tpu7x:2x2x1
jax: 0.10.0
libtpu: 0.0.40
codegen_flags: <defaults>
</compile_context>

<pallas_src>
import jax
import jax.numpy as jnp
from jax.experimental import pallas as pl
from jax.experimental.pallas import tpu as pltpu

BN_EPS = 1e-5
IN_DIM, HID_DIM = 1000, 500      # logical sizes from the PyTorch module
HID_PAD = 512                    # hidden padded to a lane multiple


def _round_up(n, m):
    return (n + m - 1) // m * m


def _choose_tile_b(B):
    """Batch tile: whole (8-aligned) batch for small B; for large B use
    256-aligned tiles capped at 512 with >= 4 grid steps (megacore split on
    v7x + DMA/compute overlap), which also fits v5e's default scoped VMEM."""
    if B <= 256:
        return _round_up(B, 8)
    return max(256, min(512, _round_up(-(-B // 4), 256)))


# --------------------------------------------------------------------------
# Kernel
# --------------------------------------------------------------------------
def predictor_kernel(x_ref, w1_ref, b1_ref, w2_ref, b2_ref, mask_ref, o_ref):
    # TODO(synk): training-mode dropout (F.dropout) not implemented; eval mode => identity.

    # x tile arrives f32 straight from HBM (no host-side pad/cast pass); cast
    # to bf16 on the VPU for the MXU.
    x = x_ref[...].astype(jnp.bfloat16)

    # fc1 (+ folded BN1) + ReLU.  bf16 MXU operands, f32 accumulation.
    h = jnp.dot(x, w1_ref[...], preferred_element_type=jnp.float32) + b1_ref[...]
    h = jnp.maximum(h, 0.0)

    # fc2 (+ folded BN2) + ReLU.
    z = jnp.dot(h.astype(jnp.bfloat16), w2_ref[...],
                preferred_element_type=jnp.float32) + b2_ref[...]
    z = jnp.maximum(z, 0.0)

    # Softmax over classes; padded class columns are knocked out by the
    # precomputed additive mask (0 for real classes, -1e30 for padding).
    z = z + mask_ref[...]
    zmax = jnp.max(z, axis=1, keepdims=True)
    e = jnp.exp(z - zmax)
    denom = jnp.sum(e, axis=1, keepdims=True)
    o_ref[...] = (e / denom).astype(o_ref.dtype)   # exact divide: rows sum to 1


# --------------------------------------------------------------------------
# Host-side parameter preparation: fold BN (f32), pad, cast weights to bf16.
# --------------------------------------------------------------------------
def prepare_params(raw):
    """raw: PyTorch-layout params. Returns folded/padded kernel params."""
    scale1 = raw["g1"] / jnp.sqrt(raw["v1"] + BN_EPS)
    w1 = raw["w1"].T * scale1[None, :]                       # [1000, 500]
    b1 = (raw["b1"] - raw["m1"]) * scale1 + raw["beta1"]     # [500]

    scale2 = raw["g2"] / jnp.sqrt(raw["v2"] + BN_EPS)
    w2 = raw["w2"].T * scale2[None, :]                       # [500, C]
    b2 = (raw["b2"] - raw["m2"]) * scale2 + raw["beta2"]     # [C]

    n_classes = w2.shape[1]
    cls_pad = max(128, _round_up(n_classes, 128))

    # Pad only the hidden/class dims (the contraction dim K=1000 stays
    # unpadded; padded hidden units have zero weights in and out, padded
    # class columns are masked in-kernel).
    w1p = jnp.zeros((IN_DIM, HID_PAD), jnp.float32).at[:, :HID_DIM].set(w1)
    b1p = jnp.zeros((1, HID_PAD), jnp.float32).at[0, :HID_DIM].set(b1)
    w2p = jnp.zeros((HID_PAD, cls_pad), jnp.float32).at[:HID_DIM, :n_classes].set(w2)
    b2p = jnp.zeros((1, cls_pad), jnp.float32).at[0, :n_classes].set(b2)

    # Additive softmax mask: 0 for real classes, -1e30 for padded columns.
    mask = jnp.where(jnp.arange(cls_pad)[None, :] < n_classes,
                     0.0, -1e30).astype(jnp.float32)

    return {
        "w1": w1p.astype(jnp.bfloat16),   # fold in f32 first, cast once
        "b1": b1p,                        # biases stay f32 (post-matmul math is f32)
        "w2": w2p.astype(jnp.bfloat16),
        "b2": b2p,
        "mask": mask,
        "n_classes": n_classes,
        "cls_pad": cls_pad,
    }


# --------------------------------------------------------------------------
# Wrapper
# --------------------------------------------------------------------------
def predictor_forward(x, p):
    """x: [B, 1000] float32. p: output of prepare_params."""
    B, in_dim = x.shape
    assert in_dim == IN_DIM
    C, cls_pad = p["n_classes"], p["cls_pad"]

    tile_b = _choose_tile_b(B)
    B_pad = _round_up(B, tile_b)
    if B_pad != B:
        x = jnp.pad(x, ((0, B_pad - B), (0, 0)))   # batch-dim pad only; K untouched

    grid = (B_pad // tile_b,)

    out = pl.pallas_call(
        predictor_kernel,
        out_shape=jax.ShapeDtypeStruct((B_pad, cls_pad), jnp.float32),
        grid=grid,
        in_specs=[
            pl.BlockSpec((tile_b, IN_DIM), lambda i: (i, 0)),     # x: per batch tile (f32)
            pl.BlockSpec((IN_DIM, HID_PAD), lambda i: (0, 0)),    # w1: VMEM-resident
            pl.BlockSpec((1, HID_PAD), lambda i: (0, 0)),         # b1: resident
            pl.BlockSpec((HID_PAD, cls_pad), lambda i: (0, 0)),   # w2: resident
            pl.BlockSpec((1, cls_pad), lambda i: (0, 0)),         # b2: resident
            pl.BlockSpec((1, cls_pad), lambda i: (0, 0)),         # softmax mask: resident
        ],
        out_specs=pl.BlockSpec((tile_b, cls_pad), lambda i: (i, 0)),
        compiler_params=pltpu.CompilerParams(
            dimension_semantics=("parallel",)),   # batch grid shards across cores
    )(x, p["w1"], p["b1"], p["w2"], p["b2"], p["mask"])

    return out[:B, :C]


# --------------------------------------------------------------------------
# Synthetic parameters (PyTorch layout) and references
# --------------------------------------------------------------------------
def init_raw_params(key, in_dim=1000, hid_dim=500, classes=10):
    keys = jax.random.split(key, 10)
    w1 = jax.random.normal(keys[0], (hid_dim, in_dim), jnp.float32) / jnp.sqrt(in_dim)
    b1 = 0.01 * jax.random.normal(keys[1], (hid_dim,), jnp.float32)
    g1 = 1.0 + 0.1 * jax.random.normal(keys[2], (hid_dim,), jnp.float32)
    beta1 = 0.1 * jax.random.normal(keys[3], (hid_dim,), jnp.float32)
    m1 = 0.05 * jax.random.normal(keys[4], (hid_dim,), jnp.float32)
    v1 = 1.0 + 0.1 * jax.random.uniform(keys[5], (hid_dim,), jnp.float32)

    w2 = jax.random.normal(keys[6], (classes, hid_dim), jnp.float32) / jnp.sqrt(hid_dim)
    b2 = 0.01 * jax.random.normal(keys[7], (classes,), jnp.float32)
    g2 = 1.0 + 0.1 * jax.random.normal(keys[8], (classes,), jnp.float32)
    beta2 = 0.1 * jax.random.normal(keys[9], (classes,), jnp.float32)
    m2 = jnp.zeros((classes,), jnp.float32)
    v2 = jnp.ones((classes,), jnp.float32)
    return dict(w1=w1, b1=b1, g1=g1, beta1=beta1, m1=m1, v1=v1,
                w2=w2, b2=b2, g2=g2, beta2=beta2, m2=m2, v2=v2)


def reference_forward_f32(x, raw):
    """Pure-f32 PyTorch-semantics reference (eval mode)."""
    h = x @ raw["w1"].T + raw["b1"]
    h = (h - raw["m1"]) * (raw["g1"] / jnp.sqrt(raw["v1"] + BN_EPS)) + raw["beta1"]
    h = jnp.maximum(h, 0.0)
    z = h @ raw["w2"].T + raw["b2"]
    z = (z - raw["m2"]) * (raw["g2"] / jnp.sqrt(raw["v2"] + BN_EPS)) + raw["beta2"]
    z = jnp.maximum(z, 0.0)
    return jax.nn.softmax(z, axis=1)


def reference_forward_matched(x, p):
    """Reference using the exact folded/padded bf16 weights fed to the kernel."""
    C = p["n_classes"]
    xb = x.astype(jnp.bfloat16).astype(jnp.float32)
    w1 = p["w1"].astype(jnp.float32)
    w2 = p["w2"].astype(jnp.float32)
    h = jnp.maximum(xb @ w1 + p["b1"], 0.0)
    hb = h.astype(jnp.bfloat16).astype(jnp.float32)
    z = jnp.maximum(hb @ w2 + p["b2"], 0.0)
    return jax.nn.softmax(z[:, :C], axis=1)


if __name__ == "__main__":
    key = jax.random.PRNGKey(0)
    k_x, k_p = jax.random.split(key)

    B, CLASSES = 8, 10
    x = jax.random.normal(k_x, (B, IN_DIM), jnp.float32)

    raw = init_raw_params(k_p, IN_DIM, HID_DIM, CLASSES)
    prepared = prepare_params(raw)

    out = jax.block_until_ready(predictor_forward(x, prepared))
    assert out.shape == (B, CLASSES)

    ref_matched = reference_forward_matched(x, prepared)   # same folded bf16 math
    ref_f32 = reference_forward_f32(x, raw)                # original f32 semantics

    assert jnp.allclose(out, ref_matched, atol=2e-3, rtol=2e-3), "mismatch vs matched reference"
    assert jnp.allclose(out, ref_f32, atol=2e-2, rtol=2e-2), "mismatch vs f32 reference"
    assert jnp.allclose(jnp.sum(out, axis=1), 1.0, atol=1e-5), "softmax rows must sum to 1"

    print("KERNEL_OK")
</pallas_src>

<mosaic_0001>
module attributes {stable_mosaic.version = 11 : i64} {
  func.func @predictor_kernel(%arg0: i32, %arg1: memref<8x1000xf32, #tpu.memory_space<vmem>>, %arg2: memref<1000x512xbf16, #tpu.memory_space<vmem>>, %arg3: memref<1x512xf32, #tpu.memory_space<vmem>>, %arg4: memref<512x128xbf16, #tpu.memory_space<vmem>>, %arg5: memref<1x128xf32, #tpu.memory_space<vmem>>, %arg6: memref<1x128xf32, #tpu.memory_space<vmem>>, %arg7: memref<8x128xf32, #tpu.memory_space<vmem>>) attributes {dimension_semantics = [#tpu.dimension_semantics<parallel>], iteration_bounds = array<i64: 1>, scalar_prefetch = 0 : i64, scratch_operands = 0 : i64, tpu.core_type = #tpu.core_type<tc>, window_params = [{transform_indices = @transform_0, window_bounds = array<i64: 8, 1000>}, {pipeline_mode = #tpu.pipeline_mode<synchronous>, transform_indices = @transform_1, window_bounds = array<i64: 1000, 512>}, {pipeline_mode = #tpu.pipeline_mode<synchronous>, transform_indices = @transform_2, window_bounds = array<i64: 1, 512>}, {pipeline_mode = #tpu.pipeline_mode<synchronous>, transform_indices = @transform_3, window_bounds = array<i64: 512, 128>}, {pipeline_mode = #tpu.pipeline_mode<synchronous>, transform_indices = @transform_4, window_bounds = array<i64: 1, 128>}, {pipeline_mode = #tpu.pipeline_mode<synchronous>, transform_indices = @transform_5, window_bounds = array<i64: 1, 128>}, {transform_indices = @transform_6, window_bounds = array<i64: 8, 128>}]} {
    %c0 = arith.constant 0 : index
    %c0_0 = arith.constant 0 : index
    %0 = vector.load %arg1[%c0, %c0_0] : memref<8x1000xf32, #tpu.memory_space<vmem>>, vector<8x1000xf32>
    %1 = arith.truncf %0 : vector<8x1000xf32> to vector<8x1000xbf16>
    %c0_1 = arith.constant 0 : index
    %c0_2 = arith.constant 0 : index
    %2 = vector.load %arg2[%c0_1, %c0_2] : memref<1000x512xbf16, #tpu.memory_space<vmem>>, vector<1000x512xbf16>
    %cst = arith.constant dense<0.000000e+00> : vector<8x512xf32>
    %3 = tpu.matmul %1, %2, %cst {dimension_numbers = #tpu.dot_dimension_numbers<[1], [0], [0], [1], [0, 0, 1, 1], [], []>} : vector<8x1000xbf16>, vector<1000x512xbf16>, vector<8x512xf32> -> vector<8x512xf32>
    %c0_3 = arith.constant 0 : index
    %c0_4 = arith.constant 0 : index
    %4 = vector.load %arg3[%c0_3, %c0_4] : memref<1x512xf32, #tpu.memory_space<vmem>>, vector<1x512xf32>
    %5 = vector.broadcast %4 : vector<1x512xf32> to vector<8x512xf32>
    %6 = arith.addf %3, %5 : vector<8x512xf32>
    %cst_5 = arith.constant 0.000000e+00 : f32
    %7 = vector.broadcast %cst_5 : f32 to vector<8x512xf32>
    %8 = arith.maximumf %6, %7 : vector<8x512xf32>
    %9 = arith.truncf %8 : vector<8x512xf32> to vector<8x512xbf16>
    %c0_6 = arith.constant 0 : index
    %c0_7 = arith.constant 0 : index
    %10 = vector.load %arg4[%c0_6, %c0_7] : memref<512x128xbf16, #tpu.memory_space<vmem>>, vector<512x128xbf16>
    %cst_8 = arith.constant dense<0.000000e+00> : vector<8x128xf32>
    %11 = tpu.matmul %9, %10, %cst_8 {dimension_numbers = #tpu.dot_dimension_numbers<[1], [0], [0], [1], [0, 0, 1, 1], [], []>} : vector<8x512xbf16>, vector<512x128xbf16>, vector<8x128xf32> -> vector<8x128xf32>
    %c0_9 = arith.constant 0 : index
    %c0_10 = arith.constant 0 : index
    %12 = vector.load %arg5[%c0_9, %c0_10] : memref<1x128xf32, #tpu.memory_space<vmem>>, vector<1x128xf32>
    %13 = vector.broadcast %12 : vector<1x128xf32> to vector<8x128xf32>
    %14 = arith.addf %11, %13 : vector<8x128xf32>
    %cst_11 = arith.constant 0.000000e+00 : f32
    %15 = vector.broadcast %cst_11 : f32 to vector<8x128xf32>
    %16 = arith.maximumf %14, %15 : vector<8x128xf32>
    %c0_12 = arith.constant 0 : index
    %c0_13 = arith.constant 0 : index
    %17 = vector.load %arg6[%c0_12, %c0_13] : memref<1x128xf32, #tpu.memory_space<vmem>>, vector<1x128xf32>
    %18 = vector.broadcast %17 : vector<1x128xf32> to vector<8x128xf32>
    %19 = arith.addf %16, %18 : vector<8x128xf32>
    %cst_14 = arith.constant dense<0xFF800000> : vector<8xf32>
    %20 = vector.multi_reduction <maximumf>, %19, %cst_14 [1] : vector<8x128xf32> to vector<8xf32>
    %21 = vector.shape_cast %20 : vector<8xf32> to vector<8x1xf32>
    %22 = vector.broadcast %21 : vector<8x1xf32> to vector<8x128xf32>
    %23 = arith.subf %19, %22 : vector<8x128xf32>
    %24 = math.exp %23 : vector<8x128xf32>
    %cst_15 = arith.constant dense<0.000000e+00> : vector<8xf32>
    %25 = vector.multi_reduction <add>, %24, %cst_15 [1] : vector<8x128xf32> to vector<8xf32>
    %26 = vector.shape_cast %25 : vector<8xf32> to vector<8x1xf32>
    %27 = vector.broadcast %26 : vector<8x1xf32> to vector<8x128xf32>
    %28 = arith.divf %24, %27 : vector<8x128xf32>
    %c0_16 = arith.constant 0 : index
    %c0_17 = arith.constant 0 : index
    %29 = vector.load %arg7[%c0_16, %c0_17] : memref<8x128xf32, #tpu.memory_space<vmem>>, vector<8x128xf32>
    tpu.vector_store %arg7[%c0_16, %c0_17], %28 {strides = array<i32>} : memref<8x128xf32, #tpu.memory_space<vmem>>, vector<8x128xf32>,
    return
  }
  func.func @transform_0(%arg0: i32) -> (i32, i32) {
    %c0_i32 = arith.constant 0 : i32
    %c0_i32_0 = arith.constant 0 : i32
    return %arg0, %c0_i32 : i32, i32
  }
  func.func @transform_1(%arg0: i32) -> (i32, i32) {
    %c0_i32 = arith.constant 0 : i32
    %c0_i32_0 = arith.constant 0 : i32
    %c0_i32_1 = arith.constant 0 : i32
    return %c0_i32, %c0_i32_0 : i32, i32
  }
  func.func @transform_2(%arg0: i32) -> (i32, i32) {
    %c0_i32 = arith.constant 0 : i32
    %c0_i32_0 = arith.constant 0 : i32
    %c0_i32_1 = arith.constant 0 : i32
    return %c0_i32, %c0_i32_0 : i32, i32
  }
  func.func @transform_3(%arg0: i32) -> (i32, i32) {
    %c0_i32 = arith.constant 0 : i32
    %c0_i32_0 = arith.constant 0 : i32
    %c0_i32_1 = arith.constant 0 : i32
    return %c0_i32, %c0_i32_0 : i32, i32
  }
  func.func @transform_4(%arg0: i32) -> (i32, i32) {
    %c0_i32 = arith.constant 0 : i32
    %c0_i32_0 = arith.constant 0 : i32
    %c0_i32_1 = arith.constant 0 : i32
    return %c0_i32, %c0_i32_0 : i32, i32
  }
  func.func @transform_5(%arg0: i32) -> (i32, i32) {
    %c0_i32 = arith.constant 0 : i32
    %c0_i32_0 = arith.constant 0 : i32
    %c0_i32_1 = arith.constant 0 : i32
    return %c0_i32, %c0_i32_0 : i32, i32
  }
  func.func @transform_6(%arg0: i32) -> (i32, i32) {
    %c0_i32 = arith.constant 0 : i32
    %c0_i32_0 = arith.constant 0 : i32
    return %arg0, %c0_i32 : i32, i32
  }
}

</mosaic_0001>

<llo_original>
// kernel: tpu_custom_call.1
$region0: #{tpu_custom_call.1}
  #allocation0 [shape = 'u32[]', space=smem, size = 0x4, offset = 0x4, fixed_abs, tag = 'smem constant byte address 0x4 - core index']
  #allocation1 [shape = 'u32[144,128]{1,0:T(1,128)}', space=vmem, size = 0x12000, scoped, tag = 'internal scratch']
  %s0 = inlined_call_operand.hbm [shape: f32[8,1000], index: 0, kind: input, shape index: {}]
  %s1 = inlined_call_operand.hbm [shape: bf16[1000,512], index: 1, kind: input, shape index: {}]
  %s2 = inlined_call_operand.vmem [shape: f32[1,512], index: 2, kind: input, shape index: {}]
  %s3 = inlined_call_operand.hbm [shape: bf16[512,128], index: 3, kind: input, shape index: {}]
  %s4 = inlined_call_operand.vmem [shape: f32[1,128], index: 4, kind: input, shape index: {}]
  %s5 = inlined_call_operand.vmem [shape: f32[1,128], index: 5, kind: input, shape index: {}]
  %s6 = inlined_call_operand.hbm [shape: f32[8,128], index: 6, kind: output, shape index: {}]
  %s7 = sld [smem:[#allocation0]]
  $region46: #{tpu_custom_call.1} parent=0
    _
  %s9 = ssub.s32 1, %s7
  %s10 = scalar_select 0, %s9, %s7
  $region1: #{tpu_custom_call.1} parent=0
    #allocation2 [shape = 'u8[32768]{0}', space=vmem, size = 0x8000, scoped, tag = 'input window, operand 0, single buffered']
    #allocation3 [shape = 's32[1]{0}', space=sflag, size = 0x4, scoped, tag = 'scoped memory for tpu_custom_call.1']
    #allocation4 [shape = 's32[1]{0}', space=sflag, size = 0x4, scoped, tag = 'scoped memory for tpu_custom_call.1']
    #allocation5 [shape = 'u8[1024000]{0}', space=vmem, size = 0xfa000, scoped, tag = 'input window, operand 1, single buffered']
    #allocation6 [shape = 's32[1]{0}', space=sflag, size = 0x4, scoped, tag = 'scoped memory for tpu_custom_call.1']
    #allocation7 [shape = 'u8[131072]{0}', space=vmem, size = 0x20000, scoped, tag = 'input window, operand 3, single buffered']
    #allocation8 [shape = 'u8[4096]{0}', space=vmem, size = 0x1000, scoped, tag = 'output window, operand 0, single buffered']
    %11 = vsyncpa [#allocation3], 0
    %12 = vsyncpa [#allocation6], 0
    %13 = vsyncpa [#allocation4], 0
    // Predicated region
    $region2: #{tpu_custom_call.1} parent=1 // pred_check
      _
    $region3: #{tpu_custom_call.1} parent=1 // pred_check_branch
      %15 = sbr.rel (0) target = $region5
    $region4: #{tpu_custom_call.1} parent=1 // pred_region
      %s17 = ssub.s32 1024, 1024
      %18 = vsyncadd [#allocation3], %s17
      %s20 = sshll.u32 [#allocation2], 4
      %s21 = int_to_ptr.vmem [resolvable:$true] %s20
      %23 = dma.hbm_to_vmem [thread:$0]  %s0, 1024, %s21, [#allocation3]
    $region5: #{tpu_custom_call.1} parent=1 // pred_fallthru
      _
    // Predicated region
    $region6: #{tpu_custom_call.1} parent=1 // pred_check
      _
    $region7: #{tpu_custom_call.1} parent=1 // pred_check_branch
      %25 = sbr.rel (0) target = $region9
    $region8: #{tpu_custom_call.1} parent=1 // pred_region
      %s27 = ssub.s32 32000, 32000
      %28 = vsyncadd [#allocation6], %s27
      %s29 = sshll.u32 [#allocation5], 4
      %s30 = int_to_ptr.vmem [resolvable:$true] %s29
      %35 = dma.hbm_to_vmem [thread:$0]  %s1, 32000, %s30, [#allocation6], 256, 256, 16
    $region9: #{tpu_custom_call.1} parent=1 // pred_fallthru
      _
    // Predicated region
    $region10: #{tpu_custom_call.1} parent=1 // pred_check
      _
    $region11: #{tpu_custom_call.1} parent=1 // pred_check_branch
      %37 = sbr.rel (0) target = $region13
    $region12: #{tpu_custom_call.1} parent=1 // pred_region
      _
    $region13: #{tpu_custom_call.1} parent=1 // pred_fallthru
      _
    // Predicated region
    $region14: #{tpu_custom_call.1} parent=1 // pred_check
      _
    $region15: #{tpu_custom_call.1} parent=1 // pred_check_branch
      %39 = sbr.rel (0) target = $region17
    $region16: #{tpu_custom_call.1} parent=1 // pred_region
      %s41 = ssub.s32 4096, 4096
      %42 = vsyncadd [#allocation6], %s41
      %s43 = sshll.u32 [#allocation7], 4
      %s44 = int_to_ptr.vmem [resolvable:$true] %s43
      %49 = dma.hbm_to_vmem [thread:$0]  %s3, 4096, %s44, [#allocation6], 64, 64, 4
    $region17: #{tpu_custom_call.1} parent=1 // pred_fallthru
      _
    // Predicated region
    $region18: #{tpu_custom_call.1} parent=1 // pred_check
      _
    $region19: #{tpu_custom_call.1} parent=1 // pred_check_branch
      %51 = sbr.rel (0) target = $region21
    $region20: #{tpu_custom_call.1} parent=1 // pred_region
      _
    $region21: #{tpu_custom_call.1} parent=1 // pred_fallthru
      _
    // Predicated region
    $region22: #{tpu_custom_call.1} parent=1 // pred_check
      _
    $region23: #{tpu_custom_call.1} parent=1 // pred_check_branch
      %53 = sbr.rel (0) target = $region25
    $region24: #{tpu_custom_call.1} parent=1 // pred_region
      _
    $region25: #{tpu_custom_call.1} parent=1 // pred_fallthru
      _
    // Predicated region
    $region26: #{tpu_custom_call.1} parent=1 // pred_check
      _
    $region27: #{tpu_custom_call.1} parent=1 // pred_check_branch
      %55 = sbr.rel (0) target = $region29
    $region28: #{tpu_custom_call.1} parent=1 // pred_region
      %56 = dma.done [#allocation3], 1024
    $region29: #{tpu_custom_call.1} parent=1 // pred_fallthru
      _
    // Predicated region
    $region30: #{tpu_custom_call.1} parent=1 // pred_check
      _
    $region31: #{tpu_custom_call.1} parent=1 // pred_check_branch
      %58 = sbr.rel (0) target = $region33
    $region32: #{tpu_custom_call.1} parent=1 // pred_region
      %59 = dma.done [#allocation6], 32000
    $region33: #{tpu_custom_call.1} parent=1 // pred_fallthru
      _
    // Predicated region
    $region34: #{tpu_custom_call.1} parent=1 // pred_check
      _
    $region35: #{tpu_custom_call.1} parent=1 // pred_check_branch
      %61 = sbr.rel (0) target = $region37
    $region36: #{tpu_custom_call.1} parent=1 // pred_region
      %62 = dma.done [#allocation6], 4096
    $region37: #{tpu_custom_call.1} parent=1 // pred_fallthru
      _
    %v64 = vld [vmem:[#allocation2] sm:$0xff]
    %v65 = vld [vmem:[#allocation2 + $0x8] sm:$0xff]
    %v66 = vld [vmem:[#allocation2 + $0x10] sm:$0xff]
    %v67 = vld [vmem:[#allocation2 + $0x18] sm:$0xff]
    %v68 = vld [vmem:[#allocation2 + $0x20] sm:$0xff]
    %v69 = vld [vmem:[#allocation2 + $0x28] sm:$0xff]
    %v70 = vld [vmem:[#allocation2 + $0x30] sm:$0xff]
    %v71 = vld [vmem:[#allocation2 + $0x38] sm:$0xff]
    %v72 = vpack.c.bf16 %v64, %v64
    %v73 = vpack.c.bf16 %v65, %v65
    %v74 = vpack.c.bf16 %v66, %v66
    %v75 = vpack.c.bf16 %v67, %v67
    %v76 = vpack.c.bf16 %v68, %v68
    %v77 = vpack.c.bf16 %v69, %v69
    %v78 = vpack.c.bf16 %v70, %v70
    %v79 = vpack.c.bf16 %v71, %v71
    %v80 = vld [vmem:[#allocation5] sm:$0xff]
    %v81 = vld [vmem:[#allocation5 + $0x8] sm:$0xff]
    %v82 = vld [vmem:[#allocation5 + $0x10] sm:$0xff]
    %v83 = vld [vmem:[#allocation5 + $0x18] sm:$0xff]
    %v84 = vld [vmem:[#allocation5 + $0x20] sm:$0xff]
    %v85 = vld [vmem:[#allocation5 + $0x28] sm:$0xff]
    %v86 = vld [vmem:[#allocation5 + $0x30] sm:$0xff]
    %v87 = vld [vmem:[#allocation5 + $0x38] sm:$0xff]
    %v88 = vld [vmem:[#allocation5 + $0x40] sm:$0xff]
    %v89 = vld [vmem:[#allocation5 + $0x48] sm:$0xff]
    %v90 = vld [vmem:[#allocation5 + $0x50] sm:$0xff]
    %v91 = vld [vmem:[#allocation5 + $0x58] sm:$0xff]
    %v92 = vld [vmem:[#allocation5 + $0x60] sm:$0xff]
    %v93 = vld [vmem:[#allocation5 + $0x68] sm:$0xff]
    %v94 = vld [vmem:[#allocation5 + $0x70] sm:$0xff]
    %v95 = vld [vmem:[#allocation5 + $0x78] sm:$0xff]
    %v96 = vld [vmem:[#allocation5 + $0x80] sm:$0xff]
    %v97 = vld [vmem:[#allocation5 + $0x88] sm:$0xff]
    %v98 = vld [vmem:[#allocation5 + $0x90] sm:$0xff]
    %v99 = vld [vmem:[#allocation5 + $0x98] sm:$0xff]
    %v100 = vld [vmem:[#allocation5 + $0xa0] sm:$0xff]
    %v101 = vld [vmem:[#allocation5 + $0xa8] sm:$0xff]
    %v102 = vld [vmem:[#allocation5 + $0xb0] sm:$0xff]
    %v103 = vld [vmem:[#allocation5 + $0xb8] sm:$0xff]
    %v104 = vld [vmem:[#allocation5 + $0xc0] sm:$0xff]
    %v105 = vld [vmem:[#allocation5 + $0xc8] sm:$0xff]
    %v106 = vld [vmem:[#allocation5 + $0xd0] sm:$0xff]
    %v107 = vld [vmem:[#allocation5 + $0xd8] sm:$0xff]
    %v108 = vld [vmem:[#allocation5 + $0xe0] sm:$0xff]
    %v109 = vld [vmem:[#allocation5 + $0xe8] sm:$0xff]
    %v110 = vld [vmem:[#allocation5 + $0xf0] sm:$0xff]
    %v111 = vld [vmem:[#allocation5 + $0xf8] sm:$0xff]
    %v112 = vld [vmem:[#allocation5 + $0x100] sm:$0xff]
    %v113 = vld [vmem:[#allocation5 + $0x108] sm:$0xff]
    %v114 = vld [vmem:[#allocation5 + $0x110] sm:$0xff]
    %v115 = vld [vmem:[#allocation5 + $0x118] sm:$0xff]
    %v116 = vld [vmem:[#allocation5 + $0x120] sm:$0xff]
    %v117 = vld [vmem:[#allocation5 + $0x128] sm:$0xff]
    %v118 = vld [vmem:[#allocation5 + $0x130] sm:$0xff]
    %v119 = vld [vmem:[#allocation5 + $0x138] sm:$0xff]
    %v120 = vld [vmem:[#allocation5 + $0x140] sm:$0xff]
    %v121 = vld [vmem:[#allocation5 + $0x148] sm:$0xff]
    %v122 = vld [vmem:[#allocation5 + $0x150] sm:$0xff]
    %v123 = vld [vmem:[#allocation5 + $0x158] sm:$0xff]
    %v124 = vld [vmem:[#allocation5 + $0x160] sm:$0xff]
    %v125 = vld [vmem:[#allocation5 + $0x168] sm:$0xff]
    %v126 = vld [vmem:[#allocation5 + $0x170] sm:$0xff]
    %v127 = vld [vmem:[#allocation5 + $0x178] sm:$0xff]
    %v128 = vld [vmem:[#allocation5 + $0x180] sm:$0xff]
    %v129 = vld [vmem:[#allocation5 + $0x188] sm:$0xff]
    %v130 = vld [vmem:[#allocation5 + $0x190] sm:$0xff]
    %v131 = vld [vmem:[#allocation5 + $0x198] sm:$0xff]
    %v132 = vld [vmem:[#allocation5 + $0x1a0] sm:$0xff]
    %v133 = vld [vmem:[#allocation5 + $0x1a8] sm:$0xff]
    %v134 = vld [vmem:[#allocation5 + $0x1b0] sm:$0xff]
    %v135 = vld [vmem:[#allocation5 + $0x1b8] sm:$0xff]
    %v136 = vld [vmem:[#allocation5 + $0x1c0] sm:$0xff]
    %v137 = vld [vmem:[#allocation5 + $0x1c8] sm:$0xff]
    %v138 = vld [vmem:[#allocation5 + $0x1d0] sm:$0xff]
    %v139 = vld [vmem:[#allocation5 + $0x1d8] sm:$0xff]
    %v140 = vld [vmem:[#allocation5 + $0x1e0] sm:$0xff]
    %v141 = vld [vmem:[#allocation5 + $0x1e8] sm:$0xff]
    %v142 = vld [vmem:[#allocation5 + $0x1f0] sm:$0xff]
    %v143 = vld [vmem:[#allocation5 + $0x1f8] sm:$0xff]
    %v144 = vld [vmem:[#allocation5 + $0x200] sm:$0xff]
    %v145 = vld [vmem:[#allocation5 + $0x208] sm:$0xff]
    %v146 = vld [vmem:[#allocation5 + $0x210] sm:$0xff]
    %v147 = vld [vmem:[#allocation5 + $0x218] sm:$0xff]
    %v148 = vld [vmem:[#allocation5 + $0x220] sm:$0xff]
    %v149 = vld [vmem:[#allocation5 + $0x228] sm:$0xff]
    %v150 = vld [vmem:[#allocation5 + $0x230] sm:$0xff]
    %v151 = vld [vmem:[#allocation5 + $0x238] sm:$0xff]
    %v152 = vld [vmem:[#allocation5 + $0x240] sm:$0xff]
    %v153 = vld [vmem:[#allocation5 + $0x248] sm:$0xff]
    %v154 = vld [vmem:[#allocation5 + $0x250] sm:$0xff]
    %v155 = vld [vmem:[#allocation5 + $0x258] sm:$0xff]
    %v156 = vld [vmem:[#allocation5 + $0x260] sm:$0xff]
    %v157 = vld [vmem:[#allocation5 + $0x268] sm:$0xff]
    %v158 = vld [vmem:[#allocation5 + $0x270] sm:$0xff]
    %v159 = vld [vmem:[#allocation5 + $0x278] sm:$0xff]
    %v160 = vld [vmem:[#allocation5 + $0x280] sm:$0xff]
    %v161 = vld [vmem:[#allocation5 + $0x288] sm:$0xff]
    %v162 = vld [vmem:[#allocation5 + $0x290] sm:$0xff]
    %v163 = vld [vmem:[#allocation5 + $0x298] sm:$0xff]
    %v164 = vld [vmem:[#allocation5 + $0x2a0] sm:$0xff]
    %v165 = vld [vmem:[#allocation5 + $0x2a8] sm:$0xff]
    %v166 = vld [vmem:[#allocation5 + $0x2b0] sm:$0xff]
    %v167 = vld [vmem:[#allocation5 + $0x2b8] sm:$0xff]
    %v168 = vld [vmem:[#allocation5 + $0x2c0] sm:$0xff]
    %v169 = vld [vmem:[#allocation5 + $0x2c8] sm:$0xff]
    %v170 = vld [vmem:[#allocation5 + $0x2d0] sm:$0xff]
    %v171 = vld [vmem:[#allocation5 + $0x2d8] sm:$0xff]
    %v172 = vld [vmem:[#allocation5 + $0x2e0] sm:$0xff]
    %v173 = vld [vmem:[#allocation5 + $0x2e8] sm:$0xff]
    %v174 = vld [vmem:[#allocation5 + $0x2f0] sm:$0xff]
    %v175 = vld [vmem:[#allocation5 + $0x2f8] sm:$0xff]
    %v176 = vld [vmem:[#allocation5 + $0x300] sm:$0xff]
    %v177 = vld [vmem:[#allocation5 + $0x308] sm:$0xff]
    %v178 = vld [vmem:[#allocation5 + $0x310] sm:$0xff]
    %v179 = vld [vmem:[#allocation5 + $0x318] sm:$0xff]
    %v180 = vld [vmem:[#allocation5 + $0x320] sm:$0xff]
    %v181 = vld [vmem:[#allocation5 + $0x328] sm:$0xff]
    %v182 = vld [vmem:[#allocation5 + $0x330] sm:$0xff]
    %v183 = vld [vmem:[#allocation5 + $0x338] sm:$0xff]
    %v184 = vld [vmem:[#allocation5 + $0x340] sm:$0xff]
    %v185 = vld [vmem:[#allocation5 + $0x348] sm:$0xff]
    %v186 = vld [vmem:[#allocation5 + $0x350] sm:$0xff]
    %v187 = vld [vmem:[#allocation5 + $0x358] sm:$0xff]
    %v188 = vld [vmem:[#allocation5 + $0x360] sm:$0xff]
    %v189 = vld [vmem:[#allocation5 + $0x368] sm:$0xff]
    %v190 = vld [vmem:[#allocation5 + $0x370] sm:$0xff]
    %v191 = vld [vmem:[#allocation5 + $0x378] sm:$0xff]
    %v192 = vld [vmem:[#allocation5 + $0x380] sm:$0xff]
    %v193 = vld [vmem:[#allocation5 + $0x388] sm:$0xff]
    %v194 = vld [vmem:[#allocation5 + $0x390] sm:$0xff]
    %v195 = vld [vmem:[#allocation5 + $0x398] sm:$0xff]
    %v196 = vld [vmem:[#allocation5 + $0x3a0] sm:$0xff]
    %v197 = vld [vmem:[#allocation5 + $0x3a8] sm:$0xff]
    %v198 = vld [vmem:[#allocation5 + $0x3b0] sm:$0xff]
    %v199 = vld [vmem:[#allocation5 + $0x3b8] sm:$0xff]
    %v200 = vld [vmem:[#allocation5 + $0x3c0] sm:$0xff]
    %v201 = vld [vmem:[#allocation5 + $0x3c8] sm:$0xff]
    %v202 = vld [vmem:[#allocation5 + $0x3d0] sm:$0xff]
    %v203 = vld [vmem:[#allocation5 + $0x3d8] sm:$0xff]
    %v204 = vld [vmem:[#allocation5 + $0x3e0] sm:$0xff]
    %v205 = vld [vmem:[#allocation5 + $0x3e8] sm:$0xff]
    %v206 = vld [vmem:[#allocation5 + $0x3f0] sm:$0xff]
    %v207 = vld [vmem:[#allocation5 + $0x3f8] sm:$0xff]
    %v208 = vld [vmem:[#allocation5 + $0x400] sm:$0xff]
    %v209 = vld [vmem:[#allocation5 + $0x408] sm:$0xff]
    %v210 = vld [vmem:[#allocation5 + $0x410] sm:$0xff]
    %v211 = vld [vmem:[#allocation5 + $0x418] sm:$0xff]
    %v212 = vld [vmem:[#allocation5 + $0x420] sm:$0xff]
    %v213 = vld [vmem:[#allocation5 + $0x428] sm:$0xff]
    %v214 = vld [vmem:[#allocation5 + $0x430] sm:$0xff]
    %v215 = vld [vmem:[#allocation5 + $0x438] sm:$0xff]
    %v216 = vld [vmem:[#allocation5 + $0x440] sm:$0xff]
    %v217 = vld [vmem:[#allocation5 + $0x448] sm:$0xff]
    %v218 = vld [vmem:[#allocation5 + $0x450] sm:$0xff]
    %v219 = vld [vmem:[#allocation5 + $0x458] sm:$0xff]
    %v220 = vld [vmem:[#allocation5 + $0x460] sm:$0xff]
    %v221 = vld [vmem:[#allocation5 + $0x468] sm:$0xff]
    %v222 = vld [vmem:[#allocation5 + $0x470] sm:$0xff]
    %v223 = vld [vmem:[#allocation5 + $0x478] sm:$0xff]
    %v224 = vld [vmem:[#allocation5 + $0x480] sm:$0xff]
    %v225 = vld [vmem:[#allocation5 + $0x488] sm:$0xff]
    %v226 = vld [vmem:[#allocation5 + $0x490] sm:$0xff]
    %v227 = vld [vmem:[#allocation5 + $0x498] sm:$0xff]
    %v228 = vld [vmem:[#allocation5 + $0x4a0] sm:$0xff]
    %v229 = vld [vmem:[#allocation5 + $0x4a8] sm:$0xff]
    %v230 = vld [vmem:[#allocation5 + $0x4b0] sm:$0xff]
    %v231 = vld [vmem:[#allocation5 + $0x4b8] sm:$0xff]
    %v232 = vld [vmem:[#allocation5 + $0x4c0] sm:$0xff]
    %v233 = vld [vmem:[#allocation5 + $0x4c8] sm:$0xff]
    %v234 = vld [vmem:[#allocation5 + $0x4d0] sm:$0xff]
    %v235 = vld [vmem:[#allocation5 + $0x4d8] sm:$0xff]
    %v236 = vld [vmem:[#allocation5 + $0x4e0] sm:$0xff]
    %v237 = vld [vmem:[#allocation5 + $0x4e8] sm:$0xff]
    %v238 = vld [vmem:[#allocation5 + $0x4f0] sm:$0xff]
    %v239 = vld [vmem:[#allocation5 + $0x4f8] sm:$0xff]
    %v240 = vld [vmem:[#allocation5 + $0x500] sm:$0xff]
    %v241 = vld [vmem:[#allocation5 + $0x508] sm:$0xff]
    %v242 = vld [vmem:[#allocation5 + $0x510] sm:$0xff]
    %v243 = vld [vmem:[#allocation5 + $0x518] sm:$0xff]
    %v244 = vld [vmem:[#allocation5 + $0x520] sm:$0xff]
    %v245 = vld [vmem:[#allocation5 + $0x528] sm:$0xff]
    %v246 = vld [vmem:[#allocation5 + $0x530] sm:$0xff]
    %v247 = vld [vmem:[#allocation5 + $0x538] sm:$0xff]
    %v248 = vld [vmem:[#allocation5 + $0x540] sm:$0xff]
    %v249 = vld [vmem:[#allocation5 + $0x548] sm:$0xff]
    %v250 = vld [vmem:[#allocation5 + $0x550] sm:$0xff]
    %v251 = vld [vmem:[#allocation5 + $0x558] sm:$0xff]
    %v252 = vld [vmem:[#allocation5 + $0x560] sm:$0xff]
    %v253 = vld [vmem:[#allocation5 + $0x568] sm:$0xff]
    %v254 = vld [vmem:[#allocation5 + $0x570] sm:$0xff]
    %v255 = vld [vmem:[#allocation5 + $0x578] sm:$0xff]
    %v256 = vld [vmem:[#allocation5 + $0x580] sm:$0xff]
    %v257 = vld [vmem:[#allocation5 + $0x588] sm:$0xff]
    %v258 = vld [vmem:[#allocation5 + $0x590] sm:$0xff]
    %v259 = vld [vmem:[#allocation5 + $0x598] sm:$0xff]
    %v260 = vld [vmem:[#allocation5 + $0x5a0] sm:$0xff]
    %v261 = vld [vmem:[#allocation5 + $0x5a8] sm:$0xff]
    %v262 = vld [vmem:[#allocation5 + $0x5b0] sm:$0xff]
    %v263 = vld [vmem:[#allocation5 + $0x5b8] sm:$0xff]
    %v264 = vld [vmem:[#allocation5 + $0x5c0] sm:$0xff]
    %v265 = vld [vmem:[#allocation5 + $0x5c8] sm:$0xff]
    %v266 = vld [vmem:[#allocation5 + $0x5d0] sm:$0xff]
    %v267 = vld [vmem:[#allocation5 + $0x5d8] sm:$0xff]
    %v268 = vld [vmem:[#allocation5 + $0x5e0] sm:$0xff]
    %v269 = vld [vmem:[#allocation5 + $0x5e8] sm:$0xff]
    %v270 = vld [vmem:[#allocation5 + $0x5f0] sm:$0xff]
    %v271 = vld [vmem:[#allocation5 + $0x5f8] sm:$0xff]
    %v272 = vld [vmem:[#allocation5 + $0x600] sm:$0xff]
    %v273 = vld [vmem:[#allocation5 + $0x608] sm:$0xff]
    %v274 = vld [vmem:[#allocation5 + $0x610] sm:$0xff]
    %v275 = vld [vmem:[#allocation5 + $0x618] sm:$0xff]
    %v276 = vld [vmem:[#allocation5 + $0x620] sm:$0xff]
    %v277 = vld [vmem:[#allocation5 + $0x628] sm:$0xff]
    %v278 = vld [vmem:[#allocation5 + $0x630] sm:$0xff]
    %v279 = vld [vmem:[#allocation5 + $0x638] sm:$0xff]
    %v280 = vld [vmem:[#allocation5 + $0x640] sm:$0xff]
    %v281 = vld [vmem:[#allocation5 + $0x648] sm:$0xff]
    %v282 = vld [vmem:[#allocation5 + $0x650] sm:$0xff]
    %v283 = vld [vmem:[#allocation5 + $0x658] sm:$0xff]
    %v284 = vld [vmem:[#allocation5 + $0x660] sm:$0xff]
    %v285 = vld [vmem:[#allocation5 + $0x668] sm:$0xff]
    %v286 = vld [vmem:[#allocation5 + $0x670] sm:$0xff]
    %v287 = vld [vmem:[#allocation5 + $0x678] sm:$0xff]
    %v288 = vld [vmem:[#allocation5 + $0x680] sm:$0xff]
    %v289 = vld [vmem:[#allocation5 + $0x688] sm:$0xff]
    %v290 = vld [vmem:[#allocation5 + $0x690] sm:$0xff]
    %v291 = vld [vmem:[#allocation5 + $0x698] sm:$0xff]
    %v292 = vld [vmem:[#allocation5 + $0x6a0] sm:$0xff]
    %v293 = vld [vmem:[#allocation5 + $0x6a8] sm:$0xff]
    %v294 = vld [vmem:[#allocation5 + $0x6b0] sm:$0xff]
    %v295 = vld [vmem:[#allocation5 + $0x6b8] sm:$0xff]
    %v296 = vld [vmem:[#allocation5 + $0x6c0] sm:$0xff]
    %v297 = vld [vmem:[#allocation5 + $0x6c8] sm:$0xff]
    %v298 = vld [vmem:[#allocation5 + $0x6d0] sm:$0xff]
    %v299 = vld [vmem:[#allocation5 + $0x6d8] sm:$0xff]
    %v300 = vld [vmem:[#allocation5 + $0x6e0] sm:$0xff]
    %v301 = vld [vmem:[#allocation5 + $0x6e8] sm:$0xff]
    %v302 = vld [vmem:[#allocation5 + $0x6f0] sm:$0xff]
    %v303 = vld [vmem:[#allocation5 + $0x6f8] sm:$0xff]
    %v304 = vld [vmem:[#allocation5 + $0x700] sm:$0xff]
    %v305 = vld [vmem:[#allocation5 + $0x708] sm:$0xff]
    %v306 = vld [vmem:[#allocation5 + $0x710] sm:$0xff]
    %v307 = vld [vmem:[#allocation5 + $0x718] sm:$0xff]
    %v308 = vld [vmem:[#allocation5 + $0x720] sm:$0xff]
    %v309 = vld [vmem:[#allocation5 + $0x728] sm:$0xff]
    %v310 = vld [vmem:[#allocation5 + $0x730] sm:$0xff]
    %v311 = vld [vmem:[#allocation5 + $0x738] sm:$0xff]
    %v312 = vld [vmem:[#allocation5 + $0x740] sm:$0xff]
    %v313 = vld [vmem:[#allocation5 + $0x748] sm:$0xff]
    %v314 = vld [vmem:[#allocation5 + $0x750] sm:$0xff]
    %v315 = vld [vmem:[#allocation5 + $0x758] sm:$0xff]
    %v316 = vld [vmem:[#allocation5 + $0x760] sm:$0xff]
    %v317 = vld [vmem:[#allocation5 + $0x768] sm:$0xff]
    %v318 = vld [vmem:[#allocation5 + $0x770] sm:$0xff]
    %v319 = vld [vmem:[#allocation5 + $0x778] sm:$0xff]
    %v320 = vld [vmem:[#allocation5 + $0x780] sm:$0xff]
    %v321 = vld [vmem:[#allocation5 + $0x788] sm:$0xff]
    %v322 = vld [vmem:[#allocation5 + $0x790] sm:$0xff]
    %v323 = vld [vmem:[#allocation5 + $0x798] sm:$0xff]
    %v324 = vld [vmem:[#allocation5 + $0x7a0] sm:$0xff]
    %v325 = vld [vmem:[#allocation5 + $0x7a8] sm:$0xff]
    %v326 = vld [vmem:[#allocation5 + $0x7b0] sm:$0xff]
    %v327 = vld [vmem:[#allocation5 + $0x7b8] sm:$0xff]
    %v328 = vld [vmem:[#allocation5 + $0x7c0] sm:$0xff]
    %v329 = vld [vmem:[#allocation5 + $0x7c8] sm:$0xff]
    %v330 = vld [vmem:[%s2] sm:$0xf]
    %v332 = vlaneseq
    %v333 = vshrl.u32 %v332, 7
    %v334 = vsub.s32 0, %v333
    %v335 = vrot.slane %v330, %v334
    %v336 = vlaneseq
    %v337 = vshrl.u32 %v336, 7
    %v338 = vsub.s32 1, %v337
    %v339 = vrot.slane %v330, %v338
    %v340 = vlaneseq
    %v341 = vshrl.u32 %v340, 7
    %v342 = vsub.s32 2, %v341
    %v343 = vrot.slane %v330, %v342
    %v344 = vlaneseq
    %v345 = vshrl.u32 %v344, 7
    %v346 = vsub.s32 3, %v345
    %v347 = vrot.slane %v330, %v346
    %v602 = vunpack.c.l.b16 %v80
    %v603 = vunpack.c.h.b16 %v80
    %v604 = vunpack.c.l.b16 %v81
    %v605 = vunpack.c.h.b16 %v81
    %v606 = vunpack.c.l.b16 %v82
    %v607 = vunpack.c.h.b16 %v82
    %v608 = vunpack.c.l.b16 %v83
    %v609 = vunpack.c.h.b16 %v83
    %v610 = vunpack.c.l.b16 %v84
    %v611 = vunpack.c.h.b16 %v84
    %v612 = vunpack.c.l.b16 %v85
    %v613 = vunpack.c.h.b16 %v85
    %v614 = vunpack.c.l.b16 %v86
    %v615 = vunpack.c.h.b16 %v86
    %v616 = vunpack.c.l.b16 %v87
    %v617 = vunpack.c.h.b16 %v87
    %v618 = vunpack.c.l.b16 %v88
    %v619 = vunpack.c.h.b16 %v88
    %v620 = vunpack.c.l.b16 %v89
    %v621 = vunpack.c.h.b16 %v89
    %v622 = vunpack.c.l.b16 %v90
    %v623 = vunpack.c.h.b16 %v90
    %v624 = vunpack.c.l.b16 %v91
    %v625 = vunpack.c.h.b16 %v91
    %v626 = vunpack.c.l.b16 %v92
    %v627 = vunpack.c.h.b16 %v92
    %v628 = vunpack.c.l.b16 %v93
    %v629 = vunpack.c.h.b16 %v93
    %v630 = vunpack.c.l.b16 %v94
    %v631 = vunpack.c.h.b16 %v94
    %v632 = vunpack.c.l.b16 %v95
    %v633 = vunpack.c.h.b16 %v95
    %v634 = vunpack.c.l.b16 %v96
    %v635 = vunpack.c.h.b16 %v96
    %v636 = vunpack.c.l.b16 %v97
    %v637 = vunpack.c.h.b16 %v97
    %v638 = vunpack.c.l.b16 %v98
    %v639 = vunpack.c.h.b16 %v98
    %v640 = vunpack.c.l.b16 %v99
    %v641 = vunpack.c.h.b16 %v99
    %v642 = vunpack.c.l.b16 %v100
    %v643 = vunpack.c.h.b16 %v100
    %v644 = vunpack.c.l.b16 %v101
    %v645 = vunpack.c.h.b16 %v101
    %v646 = vunpack.c.l.b16 %v102
    %v647 = vunpack.c.h.b16 %v102
    %v648 = vunpack.c.l.b16 %v103
    %v649 = vunpack.c.h.b16 %v103
    %v650 = vunpack.c.l.b16 %v104
    %v651 = vunpack.c.h.b16 %v104
    %v652 = vunpack.c.l.b16 %v105
    %v653 = vunpack.c.h.b16 %v105
    %v654 = vunpack.c.l.b16 %v106
    %v655 = vunpack.c.h.b16 %v106
    %v656 = vunpack.c.l.b16 %v107
    %v657 = vunpack.c.h.b16 %v107
    %v658 = vunpack.c.l.b16 %v108
    %v659 = vunpack.c.h.b16 %v108
    %v660 = vunpack.c.l.b16 %v109
    %v661 = vunpack.c.h.b16 %v109
    %v662 = vunpack.c.l.b16 %v110
    %v663 = vunpack.c.h.b16 %v110
    %v664 = vunpack.c.l.b16 %v111
    %v665 = vunpack.c.h.b16 %v111
    %v666 = vunpack.c.l.b16 %v112
    %v667 = vunpack.c.h.b16 %v112
    %v668 = vunpack.c.l.b16 %v113
    %v669 = vunpack.c.h.b16 %v113
    %v670 = vunpack.c.l.b16 %v114
    %v671 = vunpack.c.h.b16 %v114
    %v672 = vunpack.c.l.b16 %v115
    %v673 = vunpack.c.h.b16 %v115
    %v674 = vunpack.c.l.b16 %v116
    %v675 = vunpack.c.h.b16 %v116
    %v676 = vunpack.c.l.b16 %v117
    %v677 = vunpack.c.h.b16 %v117
    %v678 = vunpack.c.l.b16 %v118
    %v679 = vunpack.c.h.b16 %v118
    %v680 = vunpack.c.l.b16 %v119
    %v681 = vunpack.c.h.b16 %v119
    %v682 = vunpack.c.l.b16 %v120
    %v683 = vunpack.c.h.b16 %v120
    %v684 = vunpack.c.l.b16 %v121
    %v685 = vunpack.c.h.b16 %v121
    %v686 = vunpack.c.l.b16 %v122
    %v687 = vunpack.c.h.b16 %v122
    %v688 = vunpack.c.l.b16 %v123
    %v689 = vunpack.c.h.b16 %v123
    %v690 = vunpack.c.l.b16 %v124
    %v691 = vunpack.c.h.b16 %v124
    %v692 = vunpack.c.l.b16 %v125
    %v693 = vunpack.c.h.b16 %v125
    %v694 = vunpack.c.l.b16 %v126
    %v695 = vunpack.c.h.b16 %v126
    %v696 = vunpack.c.l.b16 %v127
    %v697 = vunpack.c.h.b16 %v127
    %v698 = vunpack.c.l.b16 %v128
    %v699 = vunpack.c.h.b16 %v128
    %v700 = vunpack.c.l.b16 %v129
    %v701 = vunpack.c.h.b16 %v129
    %v702 = vunpack.c.l.b16 %v130
    %v703 = vunpack.c.h.b16 %v130
    %v704 = vunpack.c.l.b16 %v131
    %v705 = vunpack.c.h.b16 %v131
    %v706 = vunpack.c.l.b16 %v132
    %v707 = vunpack.c.h.b16 %v132
    %v708 = vunpack.c.l.b16 %v133
    %v709 = vunpack.c.h.b16 %v133
    %v710 = vunpack.c.l.b16 %v134
    %v711 = vunpack.c.h.b16 %v134
    %v712 = vunpack.c.l.b16 %v135
    %v713 = vunpack.c.h.b16 %v135
    %v714 = vunpack.c.l.b16 %v136
    %v715 = vunpack.c.h.b16 %v136
    %v716 = vunpack.c.l.b16 %v137
    %v717 = vunpack.c.h.b16 %v137
    %v718 = vunpack.c.l.b16 %v138
    %v719 = vunpack.c.h.b16 %v138
    %v720 = vunpack.c.l.b16 %v139
    %v721 = vunpack.c.h.b16 %v139
    %v722 = vunpack.c.l.b16 %v140
    %v723 = vunpack.c.h.b16 %v140
    %v724 = vunpack.c.l.b16 %v141
    %v725 = vunpack.c.h.b16 %v141
    %v726 = vunpack.c.l.b16 %v142
    %v727 = vunpack.c.h.b16 %v142
    %v728 = vunpack.c.l.b16 %v143
    %v729 = vunpack.c.h.b16 %v143
    %v730 = vunpack.c.l.b16 %v144
    %v731 = vunpack.c.h.b16 %v144
    %v732 = vunpack.c.l.b16 %v145
    %v733 = vunpack.c.h.b16 %v145
    %v734 = vunpack.c.l.b16 %v146
    %v735 = vunpack.c.h.b16 %v146
    %v736 = vunpack.c.l.b16 %v147
    %v737 = vunpack.c.h.b16 %v147
    %v738 = vunpack.c.l.b16 %v148
    %v739 = vunpack.c.h.b16 %v148
    %v740 = vunpack.c.l.b16 %v149
    %v741 = vunpack.c.h.b16 %v149
    %v742 = vunpack.c.l.b16 %v150
    %v743 = vunpack.c.h.b16 %v150
    %v744 = vunpack.c.l.b16 %v151
    %v745 = vunpack.c.h.b16 %v151
    %v746 = vunpack.c.l.b16 %v152
    %v747 = vunpack.c.h.b16 %v152
    %v748 = vunpack.c.l.b16 %v153
    %v749 = vunpack.c.h.b16 %v153
    %v750 = vunpack.c.l.b16 %v154
    %v751 = vunpack.c.h.b16 %v154
    %v752 = vunpack.c.l.b16 %v155
    %v753 = vunpack.c.h.b16 %v155
    %v754 = vunpack.c.l.b16 %v156
    %v755 = vunpack.c.h.b16 %v156
    %v756 = vunpack.c.l.b16 %v157
    %v757 = vunpack.c.h.b16 %v157
    %v758 = vunpack.c.l.b16 %v158
    %v759 = vunpack.c.h.b16 %v158
    %v760 = vunpack.c.l.b16 %v159
    %v761 = vunpack.c.h.b16 %v159
    %v762 = vunpack.c.l.b16 %v160
    %v763 = vunpack.c.h.b16 %v160
    %v764 = vunpack.c.l.b16 %v161
    %v765 = vunpack.c.h.b16 %v161
    %v766 = vunpack.c.l.b16 %v162
    %v767 = vunpack.c.h.b16 %v162
    %v768 = vunpack.c.l.b16 %v163
    %v769 = vunpack.c.h.b16 %v163
    %v770 = vunpack.c.l.b16 %v164
    %v771 = vunpack.c.h.b16 %v164
    %v772 = vunpack.c.l.b16 %v165
    %v773 = vunpack.c.h.b16 %v165
    %v774 = vunpack.c.l.b16 %v166
    %v775 = vunpack.c.h.b16 %v166
    %v776 = vunpack.c.l.b16 %v167
    %v777 = vunpack.c.h.b16 %v167
    %v778 = vunpack.c.l.b16 %v168
    %v779 = vunpack.c.h.b16 %v168
    %v780 = vunpack.c.l.b16 %v169
    %v781 = vunpack.c.h.b16 %v169
    %v782 = vunpack.c.l.b16 %v170
    %v783 = vunpack.c.h.b16 %v170
    %v784 = vunpack.c.l.b16 %v171
    %v785 = vunpack.c.h.b16 %v171
    %v786 = vunpack.c.l.b16 %v172
    %v787 = vunpack.c.h.b16 %v172
    %v788 = vunpack.c.l.b16 %v173
    %v789 = vunpack.c.h.b16 %v173
    %v790 = vunpack.c.l.b16 %v174
    %v791 = vunpack.c.h.b16 %v174
    %v792 = vunpack.c.l.b16 %v175
    %v793 = vunpack.c.h.b16 %v175
    %v794 = vunpack.c.l.b16 %v176
    %v795 = vunpack.c.h.b16 %v176
    %v796 = vunpack.c.l.b16 %v177
    %v797 = vunpack.c.h.b16 %v177
    %v798 = vunpack.c.l.b16 %v178
    %v799 = vunpack.c.h.b16 %v178
    %v800 = vunpack.c.l.b16 %v179
    %v801 = vunpack.c.h.b16 %v179
    %v802 = vunpack.c.l.b16 %v180
    %v803 = vunpack.c.h.b16 %v180
    %v804 = vunpack.c.l.b16 %v181
    %v805 = vunpack.c.h.b16 %v181
    %v806 = vunpack.c.l.b16 %v182
    %v807 = vunpack.c.h.b16 %v182
    %v808 = vunpack.c.l.b16 %v183
    %v809 = vunpack.c.h.b16 %v183
    %v810 = vunpack.c.l.b16 %v184
    %v811 = vunpack.c.h.b16 %v184
    %v812 = vunpack.c.l.b16 %v185
    %v813 = vunpack.c.h.b16 %v185
    %v814 = vunpack.c.l.b16 %v186
    %v815 = vunpack.c.h.b16 %v186
    %v816 = vunpack.c.l.b16 %v187
    %v817 = vunpack.c.h.b16 %v187
    %v818 = vunpack.c.l.b16 %v188
    %v819 = vunpack.c.h.b16 %v188
    %v820 = vunpack.c.l.b16 %v189
    %v821 = vunpack.c.h.b16 %v189
    %v822 = vunpack.c.l.b16 %v190
    %v823 = vunpack.c.h.b16 %v190
    %v824 = vunpack.c.l.b16 %v191
    %v825 = vunpack.c.h.b16 %v191
    %v826 = vunpack.c.l.b16 %v192
    %v827 = vunpack.c.h.b16 %v192
    %v828 = vunpack.c.l.b16 %v193
    %v829 = vunpack.c.h.b16 %v193
    %v830 = vunpack.c.l.b16 %v194
    %v831 = vunpack.c.h.b16 %v194
    %v832 = vunpack.c.l.b16 %v195
    %v833 = vunpack.c.h.b16 %v195
    %v834 = vunpack.c.l.b16 %v196
    %v835 = vunpack.c.h.b16 %v196
    %v836 = vunpack.c.l.b16 %v197
    %v837 = vunpack.c.h.b16 %v197
    %v838 = vunpack.c.l.b16 %v198
    %v839 = vunpack.c.h.b16 %v198
    %v840 = vunpack.c.l.b16 %v199
    %v841 = vunpack.c.h.b16 %v199
    %v842 = vunpack.c.l.b16 %v200
    %v843 = vunpack.c.h.b16 %v200
    %v844 = vunpack.c.l.b16 %v201
    %v845 = vunpack.c.h.b16 %v201
    %v846 = vunpack.c.l.b16 %v202
    %v847 = vunpack.c.h.b16 %v202
    %v848 = vunpack.c.l.b16 %v203
    %v849 = vunpack.c.h.b16 %v203
    %v850 = vunpack.c.l.b16 %v204
    %v851 = vunpack.c.h.b16 %v204
    %v852 = vunpack.c.l.b16 %v205
    %v853 = vunpack.c.h.b16 %v205
    %v854 = vunpack.c.l.b16 %v206
    %v855 = vunpack.c.h.b16 %v206
    %v856 = vunpack.c.l.b16 %v207
    %v857 = vunpack.c.h.b16 %v207
    %v858 = vunpack.c.l.b16 %v208
    %v859 = vunpack.c.h.b16 %v208
    %v860 = vunpack.c.l.b16 %v209
    %v861 = vunpack.c.h.b16 %v209
    %v862 = vunpack.c.l.b16 %v210
    %v863 = vunpack.c.h.b16 %v210
    %v864 = vunpack.c.l.b16 %v211
    %v865 = vunpack.c.h.b16 %v211
    %v866 = vunpack.c.l.b16 %v212
    %v867 = vunpack.c.h.b16 %v212
    %v868 = vunpack.c.l.b16 %v213
    %v869 = vunpack.c.h.b16 %v213
    %v870 = vunpack.c.l.b16 %v214
    %v871 = vunpack.c.h.b16 %v214
    %v872 = vunpack.c.l.b16 %v215
    %v873 = vunpack.c.h.b16 %v215
    %v874 = vunpack.c.l.b16 %v216
    %v875 = vunpack.c.h.b16 %v216
    %v876 = vunpack.c.l.b16 %v217
    %v877 = vunpack.c.h.b16 %v217
    %v878 = vunpack.c.l.b16 %v218
    %v879 = vunpack.c.h.b16 %v218
    %v880 = vunpack.c.l.b16 %v219
    %v881 = vunpack.c.h.b16 %v219
    %v882 = vunpack.c.l.b16 %v220
    %v883 = vunpack.c.h.b16 %v220
    %v884 = vunpack.c.l.b16 %v221
    %v885 = vunpack.c.h.b16 %v221
    %v886 = vunpack.c.l.b16 %v222
    %v887 = vunpack.c.h.b16 %v222
    %v888 = vunpack.c.l.b16 %v223
    %v889 = vunpack.c.h.b16 %v223
    %v890 = vunpack.c.l.b16 %v224
    %v891 = vunpack.c.h.b16 %v224
    %v892 = vunpack.c.l.b16 %v225
    %v893 = vunpack.c.h.b16 %v225
    %v894 = vunpack.c.l.b16 %v226
    %v895 = vunpack.c.h.b16 %v226
    %v896 = vunpack.c.l.b16 %v227
    %v897 = vunpack.c.h.b16 %v227
    %v898 = vunpack.c.l.b16 %v228
    %v899 = vunpack.c.h.b16 %v228
    %v900 = vunpack.c.l.b16 %v229
    %v901 = vunpack.c.h.b16 %v229
    %v902 = vunpack.c.l.b16 %v230
    %v903 = vunpack.c.h.b16 %v230
    %v904 = vunpack.c.l.b16 %v231
    %v905 = vunpack.c.h.b16 %v231
    %v906 = vunpack.c.l.b16 %v232
    %v907 = vunpack.c.h.b16 %v232
    %v908 = vunpack.c.l.b16 %v233
    %v909 = vunpack.c.h.b16 %v233
    %v910 = vunpack.c.l.b16 %v234
    %v911 = vunpack.c.h.b16 %v234
    %v912 = vunpack.c.l.b16 %v235
    %v913 = vunpack.c.h.b16 %v235
    %v914 = vunpack.c.l.b16 %v236
    %v915 = vunpack.c.h.b16 %v236
    %v916 = vunpack.c.l.b16 %v237
    %v917 = vunpack.c.h.b16 %v237
    %v918 = vunpack.c.l.b16 %v238
    %v919 = vunpack.c.h.b16 %v238
    %v920 = vunpack.c.l.b16 %v239
    %v921 = vunpack.c.h.b16 %v239
    %v922 = vunpack.c.l.b16 %v240
    %v923 = vunpack.c.h.b16 %v240
    %v924 = vunpack.c.l.b16 %v241
    %v925 = vunpack.c.h.b16 %v241
    %v926 = vunpack.c.l.b16 %v242
    %v927 = vunpack.c.h.b16 %v242
    %v928 = vunpack.c.l.b16 %v243
    %v929 = vunpack.c.h.b16 %v243
    %v930 = vunpack.c.l.b16 %v244
    %v931 = vunpack.c.h.b16 %v244
    %v932 = vunpack.c.l.b16 %v245
    %v933 = vunpack.c.h.b16 %v245
    %v934 = vunpack.c.l.b16 %v246
    %v935 = vunpack.c.h.b16 %v246
    %v936 = vunpack.c.l.b16 %v247
    %v937 = vunpack.c.h.b16 %v247
    %v938 = vunpack.c.l.b16 %v248
    %v939 = vunpack.c.h.b16 %v248
    %v940 = vunpack.c.l.b16 %v249
    %v941 = vunpack.c.h.b16 %v249
    %v942 = vunpack.c.l.b16 %v250
    %v943 = vunpack.c.h.b16 %v250
    %v944 = vunpack.c.l.b16 %v251
    %v945 = vunpack.c.h.b16 %v251
    %v946 = vunpack.c.l.b16 %v252
    %v947 = vunpack.c.h.b16 %v252
    %v948 = vunpack.c.l.b16 %v253
    %v949 = vunpack.c.h.b16 %v253
    %v950 = vunpack.c.l.b16 %v254
    %v951 = vunpack.c.h.b16 %v254
    %v952 = vunpack.c.l.b16 %v255
    %v953 = vunpack.c.h.b16 %v255
    %v954 = vunpack.c.l.b16 %v256
    %v955 = vunpack.c.h.b16 %v256
    %v956 = vunpack.c.l.b16 %v257
    %v957 = vunpack.c.h.b16 %v257
    %v958 = vunpack.c.l.b16 %v258
    %v959 = vunpack.c.h.b16 %v258
    %v960 = vunpack.c.l.b16 %v259
    %v961 = vunpack.c.h.b16 %v259
    %v962 = vunpack.c.l.b16 %v260
    %v963 = vunpack.c.h.b16 %v260
    %v964 = vunpack.c.l.b16 %v261
    %v965 = vunpack.c.h.b16 %v261
    %v966 = vunpack.c.l.b16 %v262
    %v967 = vunpack.c.h.b16 %v262
    %v968 = vunpack.c.l.b16 %v263
    %v969 = vunpack.c.h.b16 %v263
    %v970 = vunpack.c.l.b16 %v264
    %v971 = vunpack.c.h.b16 %v264
    %v972 = vunpack.c.l.b16 %v265
    %v973 = vunpack.c.h.b16 %v265
    %v974 = vunpack.c.l.b16 %v266
    %v975 = vunpack.c.h.b16 %v266
    %v976 = vunpack.c.l.b16 %v267
    %v977 = vunpack.c.h.b16 %v267
    %v978 = vunpack.c.l.b16 %v268
    %v979 = vunpack.c.h.b16 %v268
    %v980 = vunpack.c.l.b16 %v269
    %v981 = vunpack.c.h.b16 %v269
    %v982 = vunpack.c.l.b16 %v270
    %v983 = vunpack.c.h.b16 %v270
    %v984 = vunpack.c.l.b16 %v271
    %v985 = vunpack.c.h.b16 %v271
    %v986 = vunpack.c.l.b16 %v272
    %v987 = vunpack.c.h.b16 %v272
    %v988 = vunpack.c.l.b16 %v273
    %v989 = vunpack.c.h.b16 %v273
    %v990 = vunpack.c.l.b16 %v274
    %v991 = vunpack.c.h.b16 %v274
    %v992 = vunpack.c.l.b16 %v275
    %v993 = vunpack.c.h.b16 %v275
    %v994 = vunpack.c.l.b16 %v276
    %v995 = vunpack.c.h.b16 %v276
    %v996 = vunpack.c.l.b16 %v277
    %v997 = vunpack.c.h.b16 %v277
    %v998 = vunpack.c.l.b16 %v278
    %v999 = vunpack.c.h.b16 %v278
    %v1000 = vunpack.c.l.b16 %v279
    %v1001 = vunpack.c.h.b16 %v279
    %v1002 = vunpack.c.l.b16 %v280
    %v1003 = vunpack.c.h.b16 %v280
    %v1004 = vunpack.c.l.b16 %v281
    %v1005 = vunpack.c.h.b16 %v281
    %v1006 = vunpack.c.l.b16 %v282
    %v1007 = vunpack.c.h.b16 %v282
    %v1008 = vunpack.c.l.b16 %v283
    %v1009 = vunpack.c.h.b16 %v283
    %v1010 = vunpack.c.l.b16 %v284
    %v1011 = vunpack.c.h.b16 %v284
    %v1012 = vunpack.c.l.b16 %v285
    %v1013 = vunpack.c.h.b16 %v285
    %v1014 = vunpack.c.l.b16 %v286
    %v1015 = vunpack.c.h.b16 %v286
    %v1016 = vunpack.c.l.b16 %v287
    %v1017 = vunpack.c.h.b16 %v287
    %v1018 = vunpack.c.l.b16 %v288
    %v1019 = vunpack.c.h.b16 %v288
    %v1020 = vunpack.c.l.b16 %v289
    %v1021 = vunpack.c.h.b16 %v289
    %v1022 = vunpack.c.l.b16 %v290
    %v1023 = vunpack.c.h.b16 %v290
    %v1024 = vunpack.c.l.b16 %v291
    %v1025 = vunpack.c.h.b16 %v291
    %v1026 = vunpack.c.l.b16 %v292
    %v1027 = vunpack.c.h.b16 %v292
    %v1028 = vunpack.c.l.b16 %v293
    %v1029 = vunpack.c.h.b16 %v293
    %v1030 = vunpack.c.l.b16 %v294
    %v1031 = vunpack.c.h.b16 %v294
    %v1032 = vunpack.c.l.b16 %v295
    %v1033 = vunpack.c.h.b16 %v295
    %v1034 = vunpack.c.l.b16 %v296
    %v1035 = vunpack.c.h.b16 %v296
    %v1036 = vunpack.c.l.b16 %v297
    %v1037 = vunpack.c.h.b16 %v297
    %v1038 = vunpack.c.l.b16 %v298
    %v1039 = vunpack.c.h.b16 %v298
    %v1040 = vunpack.c.l.b16 %v299
    %v1041 = vunpack.c.h.b16 %v299
    %v1042 = vunpack.c.l.b16 %v300
    %v1043 = vunpack.c.h.b16 %v300
    %v1044 = vunpack.c.l.b16 %v301
    %v1045 = vunpack.c.h.b16 %v301
    %v1046 = vunpack.c.l.b16 %v302
    %v1047 = vunpack.c.h.b16 %v302
    %v1048 = vunpack.c.l.b16 %v303
    %v1049 = vunpack.c.h.b16 %v303
    %v1050 = vunpack.c.l.b16 %v304
    %v1051 = vunpack.c.h.b16 %v304
    %v1052 = vunpack.c.l.b16 %v305
    %v1053 = vunpack.c.h.b16 %v305
    %v1054 = vunpack.c.l.b16 %v306
    %v1055 = vunpack.c.h.b16 %v306
    %v1056 = vunpack.c.l.b16 %v307
    %v1057 = vunpack.c.h.b16 %v307
    %v1058 = vunpack.c.l.b16 %v308
    %v1059 = vunpack.c.h.b16 %v308
    %v1060 = vunpack.c.l.b16 %v309
    %v1061 = vunpack.c.h.b16 %v309
    %v1062 = vunpack.c.l.b16 %v310
    %v1063 = vunpack.c.h.b16 %v310
    %v1064 = vunpack.c.l.b16 %v311
    %v1065 = vunpack.c.h.b16 %v311
    %v1066 = vunpack.c.l.b16 %v312
    %v1067 = vunpack.c.h.b16 %v312
    %v1068 = vunpack.c.l.b16 %v313
    %v1069 = vunpack.c.h.b16 %v313
    %v1070 = vunpack.c.l.b16 %v314
    %v1071 = vunpack.c.h.b16 %v314
    %v1072 = vunpack.c.l.b16 %v315
    %v1073 = vunpack.c.h.b16 %v315
    %v1074 = vunpack.c.l.b16 %v316
    %v1075 = vunpack.c.h.b16 %v316
    %v1076 = vunpack.c.l.b16 %v317
    %v1077 = vunpack.c.h.b16 %v317
    %v1078 = vunpack.c.l.b16 %v318
    %v1079 = vunpack.c.h.b16 %v318
    %v1080 = vunpack.c.l.b16 %v319
    %v1081 = vunpack.c.h.b16 %v319
    %v1082 = vunpack.c.l.b16 %v320
    %v1083 = vunpack.c.h.b16 %v320
    %v1084 = vunpack.c.l.b16 %v321
    %v1085 = vunpack.c.h.b16 %v321
    %v1086 = vunpack.c.l.b16 %v322
    %v1087 = vunpack.c.h.b16 %v322
    %v1088 = vunpack.c.l.b16 %v323
    %v1089 = vunpack.c.h.b16 %v323
    %v1090 = vunpack.c.l.b16 %v324
    %v1091 = vunpack.c.h.b16 %v324
    %v1092 = vunpack.c.l.b16 %v325
    %v1093 = vunpack.c.h.b16 %v325
    %v1094 = vunpack.c.l.b16 %v326
    %v1095 = vunpack.c.h.b16 %v326
    %v1096 = vunpack.c.l.b16 %v327
    %v1097 = vunpack.c.h.b16 %v327
    %v1098 = vunpack.c.l.b16 %v328
    %v1099 = vunpack.c.h.b16 %v328
    %v1100 = vunpack.c.l.b16 %v329
    %v1101 = vunpack.c.h.b16 %v329
    %v1102 = vpack.c.b16 %v606, %v602
    %v1103 = vpack.c.b16 %v607, %v603
    %v1104 = vpack.c.b16 %v608, %v604
    %v1105 = vpack.c.b16 %v609, %v605
    %v1106 = vpack.c.b16 %v614, %v610
    %v1107 = vpack.c.b16 %v615, %v611
    %v1108 = vpack.c.b16 %v616, %v612
    %v1109 = vpack.c.b16 %v617, %v613
    %v1110 = vpack.c.b16 %v622, %v618
    %v1111 = vpack.c.b16 %v623, %v619
    %v1112 = vpack.c.b16 %v624, %v620
    %v1113 = vpack.c.b16 %v625, %v621
    %v1114 = vpack.c.b16 %v630, %v626
    %v1115 = vpack.c.b16 %v631, %v627
    %v1116 = vpack.c.b16 %v632, %v628
    %v1117 = vpack.c.b16 %v633, %v629
    %v1118 = vpack.c.b16 %v638, %v634
    %v1119 = vpack.c.b16 %v639, %v635
    %v1120 = vpack.c.b16 %v640, %v636
    %v1121 = vpack.c.b16 %v641, %v637
    %v1122 = vpack.c.b16 %v646, %v642
    %v1123 = vpack.c.b16 %v647, %v643
    %v1124 = vpack.c.b16 %v648, %v644
    %v1125 = vpack.c.b16 %v649, %v645
    %v1126 = vpack.c.b16 %v654, %v650
    %v1127 = vpack.c.b16 %v655, %v651
    %v1128 = vpack.c.b16 %v656, %v652
    %v1129 = vpack.c.b16 %v657, %v653
    %v1130 = vpack.c.b16 %v662, %v658
    %v1131 = vpack.c.b16 %v663, %v659
    %v1132 = vpack.c.b16 %v664, %v660
    %v1133 = vpack.c.b16 %v665, %v661
    %v1134 = vpack.c.b16 %v670, %v666
    %v1135 = vpack.c.b16 %v671, %v667
    %v1136 = vpack.c.b16 %v672, %v668
    %v1137 = vpack.c.b16 %v673, %v669
    %v1138 = vpack.c.b16 %v678, %v674
    %v1139 = vpack.c.b16 %v679, %v675
    %v1140 = vpack.c.b16 %v680, %v676
    %v1141 = vpack.c.b16 %v681, %v677
    %v1142 = vpack.c.b16 %v686, %v682
    %v1143 = vpack.c.b16 %v687, %v683
    %v1144 = vpack.c.b16 %v688, %v684
    %v1145 = vpack.c.b16 %v689, %v685
    %v1146 = vpack.c.b16 %v694, %v690
    %v1147 = vpack.c.b16 %v695, %v691
    %v1148 = vpack.c.b16 %v696, %v692
    %v1149 = vpack.c.b16 %v697, %v693
    %v1150 = vpack.c.b16 %v702, %v698
    %v1151 = vpack.c.b16 %v703, %v699
    %v1152 = vpack.c.b16 %v704, %v700
    %v1153 = vpack.c.b16 %v705, %v701
    %v1154 = vpack.c.b16 %v710, %v706
    %v1155 = vpack.c.b16 %v711, %v707
    %v1156 = vpack.c.b16 %v712, %v708
    %v1157 = vpack.c.b16 %v713, %v709
    %v1158 = vpack.c.b16 %v718, %v714
    %v1159 = vpack.c.b16 %v719, %v715
    %v1160 = vpack.c.b16 %v720, %v716
    %v1161 = vpack.c.b16 %v721, %v717
    %v1162 = vpack.c.b16 %v726, %v722
    %v1163 = vpack.c.b16 %v727, %v723
    %v1164 = vpack.c.b16 %v728, %v724
    %v1165 = vpack.c.b16 %v729, %v725
    %v1166 = vpack.c.b16 %v734, %v730
    %v1167 = vpack.c.b16 %v735, %v731
    %v1168 = vpack.c.b16 %v736, %v732
    %v1169 = vpack.c.b16 %v737, %v733
    %v1170 = vpack.c.b16 %v742, %v738
    %v1171 = vpack.c.b16 %v743, %v739
    %v1172 = vpack.c.b16 %v744, %v740
    %v1173 = vpack.c.b16 %v745, %v741
    %v1174 = vpack.c.b16 %v750, %v746
    %v1175 = vpack.c.b16 %v751, %v747
    %v1176 = vpack.c.b16 %v752, %v748
    %v1177 = vpack.c.b16 %v753, %v749
    %v1178 = vpack.c.b16 %v758, %v754
    %v1179 = vpack.c.b16 %v759, %v755
    %v1180 = vpack.c.b16 %v760, %v756
    %v1181 = vpack.c.b16 %v761, %v757
    %v1182 = vpack.c.b16 %v766, %v762
    %v1183 = vpack.c.b16 %v767, %v763
    %v1184 = vpack.c.b16 %v768, %v764
    %v1185 = vpack.c.b16 %v769, %v765
    %v1186 = vpack.c.b16 %v774, %v770
    %v1187 = vpack.c.b16 %v775, %v771
    %v1188 = vpack.c.b16 %v776, %v772
    %v1189 = vpack.c.b16 %v777, %v773
    %v1190 = vpack.c.b16 %v782, %v778
    %v1191 = vpack.c.b16 %v783, %v779
    %v1192 = vpack.c.b16 %v784, %v780
    %v1193 = vpack.c.b16 %v785, %v781
    %v1194 = vpack.c.b16 %v790, %v786
    %v1195 = vpack.c.b16 %v791, %v787
    %v1196 = vpack.c.b16 %v792, %v788
    %v1197 = vpack.c.b16 %v793, %v789
    %v1198 = vpack.c.b16 %v798, %v794
    %v1199 = vpack.c.b16 %v799, %v795
    %v1200 = vpack.c.b16 %v800, %v796
    %v1201 = vpack.c.b16 %v801, %v797
    %v1202 = vpack.c.b16 %v806, %v802
    %v1203 = vpack.c.b16 %v807, %v803
    %v1204 = vpack.c.b16 %v808, %v804
    %v1205 = vpack.c.b16 %v809, %v805
    %v1206 = vpack.c.b16 %v814, %v810
    %v1207 = vpack.c.b16 %v815, %v811
    %v1208 = vpack.c.b16 %v816, %v812
    %v1209 = vpack.c.b16 %v817, %v813
    %v1210 = vpack.c.b16 %v822, %v818
    %v1211 = vpack.c.b16 %v823, %v819
    %v1212 = vpack.c.b16 %v824, %v820
    %v1213 = vpack.c.b16 %v825, %v821
    %v1214 = vpack.c.b16 %v830, %v826
    %v1215 = vpack.c.b16 %v831, %v827
    %v1216 = vpack.c.b16 %v832, %v828
    %v1217 = vpack.c.b16 %v833, %v829
    %v1218 = vpack.c.b16 %v838, %v834
    %v1219 = vpack.c.b16 %v839, %v835
    %v1220 = vpack.c.b16 %v840, %v836
    %v1221 = vpack.c.b16 %v841, %v837
    %v1222 = vpack.c.b16 %v846, %v842
    %v1223 = vpack.c.b16 %v847, %v843
    %v1224 = vpack.c.b16 %v848, %v844
    %v1225 = vpack.c.b16 %v849, %v845
    %v1226 = vpack.c.b16 %v854, %v850
    %v1227 = vpack.c.b16 %v855, %v851
    %v1228 = vpack.c.b16 %v856, %v852
    %v1229 = vpack.c.b16 %v857, %v853
    %v1230 = vpack.c.b16 %v862, %v858
    %v1231 = vpack.c.b16 %v863, %v859
    %v1232 = vpack.c.b16 %v864, %v860
    %v1233 = vpack.c.b16 %v865, %v861
    %v1234 = vpack.c.b16 %v870, %v866
    %v1235 = vpack.c.b16 %v871, %v867
    %v1236 = vpack.c.b16 %v872, %v868
    %v1237 = vpack.c.b16 %v873, %v869
    %v1238 = vpack.c.b16 %v878, %v874
    %v1239 = vpack.c.b16 %v879, %v875
    %v1240 = vpack.c.b16 %v880, %v876
    %v1241 = vpack.c.b16 %v881, %v877
    %v1242 = vpack.c.b16 %v886, %v882
    %v1243 = vpack.c.b16 %v887, %v883
    %v1244 = vpack.c.b16 %v888, %v884
    %v1245 = vpack.c.b16 %v889, %v885
    %v1246 = vpack.c.b16 %v894, %v890
    %v1247 = vpack.c.b16 %v895, %v891
    %v1248 = vpack.c.b16 %v896, %v892
    %v1249 = vpack.c.b16 %v897, %v893
    %v1250 = vpack.c.b16 %v902, %v898
    %v1251 = vpack.c.b16 %v903, %v899
    %v1252 = vpack.c.b16 %v904, %v900
    %v1253 = vpack.c.b16 %v905, %v901
    %v1254 = vpack.c.b16 %v910, %v906
    %v1255 = vpack.c.b16 %v911, %v907
    %v1256 = vpack.c.b16 %v912, %v908
    %v1257 = vpack.c.b16 %v913, %v909
    %v1258 = vpack.c.b16 %v918, %v914
    %v1259 = vpack.c.b16 %v919, %v915
    %v1260 = vpack.c.b16 %v920, %v916
    %v1261 = vpack.c.b16 %v921, %v917
    %v1262 = vpack.c.b16 %v926, %v922
    %v1263 = vpack.c.b16 %v927, %v923
    %v1264 = vpack.c.b16 %v928, %v924
    %v1265 = vpack.c.b16 %v929, %v925
    %v1266 = vpack.c.b16 %v934, %v930
    %v1267 = vpack.c.b16 %v935, %v931
    %v1268 = vpack.c.b16 %v936, %v932
    %v1269 = vpack.c.b16 %v937, %v933
    %v1270 = vpack.c.b16 %v942, %v938
    %v1271 = vpack.c.b16 %v943, %v939
    %v1272 = vpack.c.b16 %v944, %v940
    %v1273 = vpack.c.b16 %v945, %v941
    %v1274 = vpack.c.b16 %v950, %v946
    %v1275 = vpack.c.b16 %v951, %v947
    %v1276 = vpack.c.b16 %v952, %v948
    %v1277 = vpack.c.b16 %v953, %v949
    %v1278 = vpack.c.b16 %v958, %v954
    %v1279 = vpack.c.b16 %v959, %v955
    %v1280 = vpack.c.b16 %v960, %v956
    %v1281 = vpack.c.b16 %v961, %v957
    %v1282 = vpack.c.b16 %v966, %v962
    %v1283 = vpack.c.b16 %v967, %v963
    %v1284 = vpack.c.b16 %v968, %v964
    %v1285 = vpack.c.b16 %v969, %v965
    %v1286 = vpack.c.b16 %v974, %v970
    %v1287 = vpack.c.b16 %v975, %v971
    %v1288 = vpack.c.b16 %v976, %v972
    %v1289 = vpack.c.b16 %v977, %v973
    %v1290 = vpack.c.b16 %v982, %v978
    %v1291 = vpack.c.b16 %v983, %v979
    %v1292 = vpack.c.b16 %v984, %v980
    %v1293 = vpack.c.b16 %v985, %v981
    %v1294 = vpack.c.b16 %v990, %v986
    %v1295 = vpack.c.b16 %v991, %v987
    %v1296 = vpack.c.b16 %v992, %v988
    %v1297 = vpack.c.b16 %v993, %v989
    %v1298 = vpack.c.b16 %v998, %v994
    %v1299 = vpack.c.b16 %v999, %v995
    %v1300 = vpack.c.b16 %v1000, %v996
    %v1301 = vpack.c.b16 %v1001, %v997
    %v1302 = vpack.c.b16 %v1006, %v1002
    %v1303 = vpack.c.b16 %v1007, %v1003
    %v1304 = vpack.c.b16 %v1008, %v1004
    %v1305 = vpack.c.b16 %v1009, %v1005
    %v1306 = vpack.c.b16 %v1014, %v1010
    %v1307 = vpack.c.b16 %v1015, %v1011
    %v1308 = vpack.c.b16 %v1016, %v1012
    %v1309 = vpack.c.b16 %v1017, %v1013
    %v1310 = vpack.c.b16 %v1022, %v1018
    %v1311 = vpack.c.b16 %v1023, %v1019
    %v1312 = vpack.c.b16 %v1024, %v1020
    %v1313 = vpack.c.b16 %v1025, %v1021
    %v1314 = vpack.c.b16 %v1030, %v1026
    %v1315 = vpack.c.b16 %v1031, %v1027
    %v1316 = vpack.c.b16 %v1032, %v1028
    %v1317 = vpack.c.b16 %v1033, %v1029
    %v1318 = vpack.c.b16 %v1038, %v1034
    %v1319 = vpack.c.b16 %v1039, %v1035
    %v1320 = vpack.c.b16 %v1040, %v1036
    %v1321 = vpack.c.b16 %v1041, %v1037
    %v1322 = vpack.c.b16 %v1046, %v1042
    %v1323 = vpack.c.b16 %v1047, %v1043
    %v1324 = vpack.c.b16 %v1048, %v1044
    %v1325 = vpack.c.b16 %v1049, %v1045
    %v1326 = vpack.c.b16 %v1054, %v1050
    %v1327 = vpack.c.b16 %v1055, %v1051
    %v1328 = vpack.c.b16 %v1056, %v1052
    %v1329 = vpack.c.b16 %v1057, %v1053
    %v1330 = vpack.c.b16 %v1062, %v1058
    %v1331 = vpack.c.b16 %v1063, %v1059
    %v1332 = vpack.c.b16 %v1064, %v1060
    %v1333 = vpack.c.b16 %v1065, %v1061
    %v1334 = vpack.c.b16 %v1070, %v1066
    %v1335 = vpack.c.b16 %v1071, %v1067
    %v1336 = vpack.c.b16 %v1072, %v1068
    %v1337 = vpack.c.b16 %v1073, %v1069
    %v1338 = vpack.c.b16 %v1078, %v1074
    %v1339 = vpack.c.b16 %v1079, %v1075
    %v1340 = vpack.c.b16 %v1080, %v1076
    %v1341 = vpack.c.b16 %v1081, %v1077
    %v1342 = vpack.c.b16 %v1086, %v1082
    %v1343 = vpack.c.b16 %v1087, %v1083
    %v1344 = vpack.c.b16 %v1088, %v1084
    %v1345 = vpack.c.b16 %v1089, %v1085
    %v1346 = vpack.c.b16 %v1094, %v1090
    %v1347 = vpack.c.b16 %v1095, %v1091
    %v1348 = vpack.c.b16 %v1096, %v1092
    %v1349 = vpack.c.b16 %v1097, %v1093
    %v1350 = vpack.c.b16 %v1098, %v1098
    %v1351 = vpack.c.b16 %v1099, %v1099
    %v1352 = vpack.c.b16 %v1100, %v1100
    %v1353 = vpack.c.b16 %v1101, %v1101
    %vm1602 = vcmask 850944
    %v1604 = vsel %vm1602, %v79, 0
    %vm1606 = vcmask 1043456
    %v1608 = vsel %vm1606, %v1350, 0
    %v1611 = vsel %vm1606, %v1351, 0
    %v1614 = vsel %vm1606, %v1352, 0
    %v1617 = vsel %vm1606, %v1353, 0
    %1619 = vmatprep.subr.bf16.mxu0 %v1103
    %1620 = vmatpush1.bf16.msra.mxu0 %v1102
    %1621 = vmatprep.subr.bf16.mxu0 %v1107
    %1622 = vmatpush1.bf16.msra.mxu0 %v1106
    %1623 = vmatprep.subr.bf16.mxu0 %v1111
    %1624 = vmatpush1.bf16.msra.mxu0 %v1110
    %1625 = vmatprep.subr.bf16.mxu0 %v1115
    %1626 = vmatpush1.bf16.msra.mxu0 %v1114
    %1627 = vmatprep.subr.bf16.mxu0 %v1119
    %1628 = vmatpush1.bf16.msra.mxu0 %v1118
    %1629 = vmatprep.subr.bf16.mxu0 %v1123
    %1630 = vmatpush1.bf16.msra.mxu0 %v1122
    %1631 = vmatprep.subr.bf16.mxu0 %v1127
    %1632 = vmatpush1.bf16.msra.mxu0 %v1126
    %1633 = vmatprep.subr.bf16.mxu0 %v1131
    %1634 = vmatpush1.bf16.msra.mxu0 %v1130
    %1635 = vmatprep.subr.bf16.mxu0 %v1135
    %1636 = vmatpush1.bf16.msra.mxu0 %v1134
    %1637 = vmatprep.subr.bf16.mxu0 %v1139
    %1638 = vmatpush1.bf16.msra.mxu0 %v1138
    %1639 = vmatprep.subr.bf16.mxu0 %v1143
    %1640 = vmatpush1.bf16.msra.mxu0 %v1142
    %1641 = vmatprep.subr.bf16.mxu0 %v1147
    %1642 = vmatpush1.bf16.msra.mxu0 %v1146
    %1643 = vmatprep.subr.bf16.mxu0 %v1151
    %1644 = vmatpush1.bf16.msra.mxu0 %v1150
    %1645 = vmatprep.subr.bf16.mxu0 %v1155
    %1646 = vmatpush1.bf16.msra.mxu0 %v1154
    %1647 = vmatprep.subr.bf16.mxu0 %v1159
    %1648 = vmatpush1.bf16.msra.mxu0 %v1158
    %1649 = vmatprep.subr.bf16.mxu0 %v1163
    %1650 = vmatpush1.bf16.msra.mxu0 %v1162
    %1651 = vmatprep.mubr.bf16.mxu0 %v73
    %1652 = vmatmul.mubr.bf16.gmra.mrb[0].mxu0 %v72
    %v1653 = vpop.f32.mrb[0].mxu0
    %v1654 = vadd.f32 %v335, %v1653
    %v1655 = vpop.f32.mrb[0].mxu0
    %v1656 = vadd.f32 %v339, %v1655
    %v1657 = vpop.f32.mrb[0].mxu0
    %v1658 = vpop.f32.mrb[0].mxu0
    %1659 = vdwg.mxu0
    %1660 = vmatprep.subr.bf16.mxu0 %v1167
    %1661 = vmatpush1.bf16.msra.mxu0 %v1166
    %1662 = vmatprep.subr.bf16.mxu0 %v1171
    %1663 = vmatpush1.bf16.msra.mxu0 %v1170
    %1664 = vmatprep.subr.bf16.mxu0 %v1175
    %1665 = vmatpush1.bf16.msra.mxu0 %v1174
    %1666 = vmatprep.subr.bf16.mxu0 %v1179
    %1667 = vmatpush1.bf16.msra.mxu0 %v1178
    %1668 = vmatprep.subr.bf16.mxu0 %v1183
    %1669 = vmatpush1.bf16.msra.mxu0 %v1182
    %1670 = vmatprep.subr.bf16.mxu0 %v1187
    %1671 = vmatpush1.bf16.msra.mxu0 %v1186
    %1672 = vmatprep.subr.bf16.mxu0 %v1191
    %1673 = vmatpush1.bf16.msra.mxu0 %v1190
    %1674 = vmatprep.subr.bf16.mxu0 %v1195
    %1675 = vmatpush1.bf16.msra.mxu0 %v1194
    %1676 = vmatprep.subr.bf16.mxu0 %v1199
    %1677 = vmatpush1.bf16.msra.mxu0 %v1198
    %1678 = vmatprep.subr.bf16.mxu0 %v1203
    %1679 = vmatpush1.bf16.msra.mxu0 %v1202
    %1680 = vmatprep.subr.bf16.mxu0 %v1207
    %1681 = vmatpush1.bf16.msra.mxu0 %v1206
    %1682 = vmatprep.subr.bf16.mxu0 %v1211
    %1683 = vmatpush1.bf16.msra.mxu0 %v1210
    %1684 = vmatprep.subr.bf16.mxu0 %v1215
    %1685 = vmatpush1.bf16.msra.mxu0 %v1214
    %1686 = vmatprep.subr.bf16.mxu0 %v1219
    %1687 = vmatpush1.bf16.msra.mxu0 %v1218
    %1688 = vmatprep.subr.bf16.mxu0 %v1223
    %1689 = vmatpush1.bf16.msra.mxu0 %v1222
    %1690 = vmatprep.subr.bf16.mxu0 %v1227
    %1691 = vmatpush1.bf16.msra.mxu0 %v1226
    %1692 = vmatprep.mubr.bf16.mxu0 %v75
    %1693 = vmatmul.mubr.bf16.gmra.mrb[0].mxu0 %v74
    %v1694 = vpop.f32.mrb[0].mxu0
    %v1695 = vadd.f32 %v1654, %v1694
    %v1696 = vpop.f32.mrb[0].mxu0
    %v1697 = vadd.f32 %v1656, %v1696
    %v1698 = vpop.f32.mrb[0].mxu0
    %v1699 = vpop.f32.mrb[0].mxu0
    %1700 = vdwg.mxu0
    %1701 = vmatprep.subr.bf16.mxu0 %v1231
    %1702 = vmatpush1.bf16.msra.mxu0 %v1230
    %1703 = vmatprep.subr.bf16.mxu0 %v1235
    %1704 = vmatpush1.bf16.msra.mxu0 %v1234
    %1705 = vmatprep.subr.bf16.mxu0 %v1239
    %1706 = vmatpush1.bf16.msra.mxu0 %v1238
    %1707 = vmatprep.subr.bf16.mxu0 %v1243
    %1708 = vmatpush1.bf16.msra.mxu0 %v1242
    %1709 = vmatprep.subr.bf16.mxu0 %v1247
    %1710 = vmatpush1.bf16.msra.mxu0 %v1246
    %1711 = vmatprep.subr.bf16.mxu0 %v1251
    %1712 = vmatpush1.bf16.msra.mxu0 %v1250
    %1713 = vmatprep.subr.bf16.mxu0 %v1255
    %1714 = vmatpush1.bf16.msra.mxu0 %v1254
    %1715 = vmatprep.subr.bf16.mxu0 %v1259
    %1716 = vmatpush1.bf16.msra.mxu0 %v1258
    %1717 = vmatprep.subr.bf16.mxu0 %v1263
    %1718 = vmatpush1.bf16.msra.mxu0 %v1262
    %1719 = vmatprep.subr.bf16.mxu0 %v1267
    %1720 = vmatpush1.bf16.msra.mxu0 %v1266
    %1721 = vmatprep.subr.bf16.mxu0 %v1271
    %1722 = vmatpush1.bf16.msra.mxu0 %v1270
    %1723 = vmatprep.subr.bf16.mxu0 %v1275
    %1724 = vmatpush1.bf16.msra.mxu0 %v1274
    %1725 = vmatprep.subr.bf16.mxu0 %v1279
    %1726 = vmatpush1.bf16.msra.mxu0 %v1278
    %1727 = vmatprep.subr.bf16.mxu0 %v1283
    %1728 = vmatpush1.bf16.msra.mxu0 %v1282
    %1729 = vmatprep.subr.bf16.mxu0 %v1287
    %1730 = vmatpush1.bf16.msra.mxu0 %v1286
    %1731 = vmatprep.subr.bf16.mxu0 %v1291
    %1732 = vmatpush1.bf16.msra.mxu0 %v1290
    %1733 = vmatprep.mubr.bf16.mxu0 %v77
    %1734 = vmatmul.mubr.bf16.gmra.mrb[0].mxu0 %v76
    %v1735 = vpop.f32.mrb[0].mxu0
    %v1736 = vadd.f32 %v1695, %v1735
    %v1737 = vpop.f32.mrb[0].mxu0
    %v1738 = vadd.f32 %v1697, %v1737
    %v1739 = vpop.f32.mrb[0].mxu0
    %v1740 = vpop.f32.mrb[0].mxu0
    %1741 = vdwg.mxu0
    %1742 = vmatprep.subr.bf16.mxu0 %v1295
    %1743 = vmatpush1.bf16.msra.mxu0 %v1294
    %1744 = vmatprep.subr.bf16.mxu0 %v1299
    %1745 = vmatpush1.bf16.msra.mxu0 %v1298
    %1746 = vmatprep.subr.bf16.mxu0 %v1303
    %1747 = vmatpush1.bf16.msra.mxu0 %v1302
    %1748 = vmatprep.subr.bf16.mxu0 %v1307
    %1749 = vmatpush1.bf16.msra.mxu0 %v1306
    %1750 = vmatprep.subr.bf16.mxu0 %v1311
    %1751 = vmatpush1.bf16.msra.mxu0 %v1310
    %1752 = vmatprep.subr.bf16.mxu0 %v1315
    %1753 = vmatpush1.bf16.msra.mxu0 %v1314
    %1754 = vmatprep.subr.bf16.mxu0 %v1319
    %1755 = vmatpush1.bf16.msra.mxu0 %v1318
    %1756 = vmatprep.subr.bf16.mxu0 %v1323
    %1757 = vmatpush1.bf16.msra.mxu0 %v1322
    %1758 = vmatprep.subr.bf16.mxu0 %v1327
    %1759 = vmatpush1.bf16.msra.mxu0 %v1326
    %1760 = vmatprep.subr.bf16.mxu0 %v1331
    %1761 = vmatpush1.bf16.msra.mxu0 %v1330
    %1762 = vmatprep.subr.bf16.mxu0 %v1335
    %1763 = vmatpush1.bf16.msra.mxu0 %v1334
    %1764 = vmatprep.subr.bf16.mxu0 %v1339
    %1765 = vmatpush1.bf16.msra.mxu0 %v1338
    %1766 = vmatprep.subr.bf16.mxu0 %v1343
    %1767 = vmatpush1.bf16.msra.mxu0 %v1342
    %1768 = vmatprep.subr.bf16.mxu0 %v1347
    %1769 = vmatpush1.bf16.msra.mxu0 %v1346
    %1770 = vmatprep.subr.bf16.mxu0 %v1611
    %1771 = vmatpush1.bf16.msra.mxu0 %v1608
    %1772 = vmatprep.subr.bf16.mxu0 0
    %1773 = vmatpush1.bf16.msra.mxu0 0
    %1774 = vmatprep.mubr.bf16.mxu0 %v1604
    %1775 = vmatmul.mubr.bf16.gmra.mrb[0].mxu0 %v78
    %v1776 = vpop.f32.mrb[0].mxu0
    %v1777 = vadd.f32 %v1736, %v1776
    %v1778 = vpop.f32.mrb[0].mxu0
    %v1779 = vadd.f32 %v1738, %v1778
    %v1780 = vpop.f32.mrb[0].mxu0
    %v1781 = vpop.f32.mrb[0].mxu0
    %1782 = vdwg.mxu0
    %1783 = vmatprep.subr.bf16.mxu0 %v1105
    %1784 = vmatpush1.bf16.msra.mxu0 %v1104
    %1785 = vmatprep.subr.bf16.mxu0 %v1109
    %1786 = vmatpush1.bf16.msra.mxu0 %v1108
    %1787 = vmatprep.subr.bf16.mxu0 %v1113
    %1788 = vmatpush1.bf16.msra.mxu0 %v1112
    %1789 = vmatprep.subr.bf16.mxu0 %v1117
    %1790 = vmatpush1.bf16.msra.mxu0 %v1116
    %1791 = vmatprep.subr.bf16.mxu0 %v1121
    %1792 = vmatpush1.bf16.msra.mxu0 %v1120
    %1793 = vmatprep.subr.bf16.mxu0 %v1125
    %1794 = vmatpush1.bf16.msra.mxu0 %v1124
    %1795 = vmatprep.subr.bf16.mxu0 %v1129
    %1796 = vmatpush1.bf16.msra.mxu0 %v1128
    %1797 = vmatprep.subr.bf16.mxu0 %v1133
    %1798 = vmatpush1.bf16.msra.mxu0 %v1132
    %1799 = vmatprep.subr.bf16.mxu0 %v1137
    %1800 = vmatpush1.bf16.msra.mxu0 %v1136
    %1801 = vmatprep.subr.bf16.mxu0 %v1141
    %1802 = vmatpush1.bf16.msra.mxu0 %v1140
    %1803 = vmatprep.subr.bf16.mxu0 %v1145
    %1804 = vmatpush1.bf16.msra.mxu0 %v1144
    %1805 = vmatprep.subr.bf16.mxu0 %v1149
    %1806 = vmatpush1.bf16.msra.mxu0 %v1148
    %1807 = vmatprep.subr.bf16.mxu0 %v1153
    %1808 = vmatpush1.bf16.msra.mxu0 %v1152
    %1809 = vmatprep.subr.bf16.mxu0 %v1157
    %1810 = vmatpush1.bf16.msra.mxu0 %v1156
    %1811 = vmatprep.subr.bf16.mxu0 %v1161
    %1812 = vmatpush1.bf16.msra.mxu0 %v1160
    %1813 = vmatprep.subr.bf16.mxu0 %v1165
    %1814 = vmatpush1.bf16.msra.mxu0 %v1164
    %1815 = vmatprep.mubr.bf16.mxu0 %v73
    %1816 = vmatmul.mubr.bf16.gmra.mrb[0].mxu0 %v72
    %v1817 = vpop.f32.mrb[0].mxu0
    %v1818 = vadd.f32 %v343, %v1817
    %v1819 = vpop.f32.mrb[0].mxu0
    %v1820 = vadd.f32 %v347, %v1819
    %v1821 = vpop.f32.mrb[0].mxu0
    %v1822 = vpop.f32.mrb[0].mxu0
    %1823 = vdwg.mxu0
    %1824 = vmatprep.subr.bf16.mxu0 %v1169
    %1825 = vmatpush1.bf16.msra.mxu0 %v1168
    %1826 = vmatprep.subr.bf16.mxu0 %v1173
    %1827 = vmatpush1.bf16.msra.mxu0 %v1172
    %1828 = vmatprep.subr.bf16.mxu0 %v1177
    %1829 = vmatpush1.bf16.msra.mxu0 %v1176
    %1830 = vmatprep.subr.bf16.mxu0 %v1181
    %1831 = vmatpush1.bf16.msra.mxu0 %v1180
    %1832 = vmatprep.subr.bf16.mxu0 %v1185
    %1833 = vmatpush1.bf16.msra.mxu0 %v1184
    %1834 = vmatprep.subr.bf16.mxu0 %v1189
    %1835 = vmatpush1.bf16.msra.mxu0 %v1188
    %1836 = vmatprep.subr.bf16.mxu0 %v1193
    %1837 = vmatpush1.bf16.msra.mxu0 %v1192
    %1838 = vmatprep.subr.bf16.mxu0 %v1197
    %1839 = vmatpush1.bf16.msra.mxu0 %v1196
    %1840 = vmatprep.subr.bf16.mxu0 %v1201
    %1841 = vmatpush1.bf16.msra.mxu0 %v1200
    %1842 = vmatprep.subr.bf16.mxu0 %v1205
    %1843 = vmatpush1.bf16.msra.mxu0 %v1204
    %1844 = vmatprep.subr.bf16.mxu0 %v1209
    %1845 = vmatpush1.bf16.msra.mxu0 %v1208
    %1846 = vmatprep.subr.bf16.mxu0 %v1213
    %1847 = vmatpush1.bf16.msra.mxu0 %v1212
    %1848 = vmatprep.subr.bf16.mxu0 %v1217
    %1849 = vmatpush1.bf16.msra.mxu0 %v1216
    %1850 = vmatprep.subr.bf16.mxu0 %v1221
    %1851 = vmatpush1.bf16.msra.mxu0 %v1220
    %1852 = vmatprep.subr.bf16.mxu0 %v1225
    %1853 = vmatpush1.bf16.msra.mxu0 %v1224
    %1854 = vmatprep.subr.bf16.mxu0 %v1229
    %1855 = vmatpush1.bf16.msra.mxu0 %v1228
    %1856 = vmatprep.mubr.bf16.mxu0 %v75
    %1857 = vmatmul.mubr.bf16.gmra.mrb[0].mxu0 %v74
    %v1858 = vpop.f32.mrb[0].mxu0
    %v1859 = vadd.f32 %v1818, %v1858
    %v1860 = vpop.f32.mrb[0].mxu0
    %v1861 = vadd.f32 %v1820, %v1860
    %v1862 = vpop.f32.mrb[0].mxu0
    %v1863 = vpop.f32.mrb[0].mxu0
    %1864 = vdwg.mxu0
    %1865 = vmatprep.subr.bf16.mxu0 %v1233
    %1866 = vmatpush1.bf16.msra.mxu0 %v1232
    %1867 = vmatprep.subr.bf16.mxu0 %v1237
    %1868 = vmatpush1.bf16.msra.mxu0 %v1236
    %1869 = vmatprep.subr.bf16.mxu0 %v1241
    %1870 = vmatpush1.bf16.msra.mxu0 %v1240
    %1871 = vmatprep.subr.bf16.mxu0 %v1245
    %1872 = vmatpush1.bf16.msra.mxu0 %v1244
    %1873 = vmatprep.subr.bf16.mxu0 %v1249
    %1874 = vmatpush1.bf16.msra.mxu0 %v1248
    %1875 = vmatprep.subr.bf16.mxu0 %v1253
    %1876 = vmatpush1.bf16.msra.mxu0 %v1252
    %1877 = vmatprep.subr.bf16.mxu0 %v1257
    %1878 = vmatpush1.bf16.msra.mxu0 %v1256
    %1879 = vmatprep.subr.bf16.mxu0 %v1261
    %1880 = vmatpush1.bf16.msra.mxu0 %v1260
    %1881 = vmatprep.subr.bf16.mxu0 %v1265
    %1882 = vmatpush1.bf16.msra.mxu0 %v1264
    %1883 = vmatprep.subr.bf16.mxu0 %v1269
    %1884 = vmatpush1.bf16.msra.mxu0 %v1268
    %1885 = vmatprep.subr.bf16.mxu0 %v1273
    %1886 = vmatpush1.bf16.msra.mxu0 %v1272
    %1887 = vmatprep.subr.bf16.mxu0 %v1277
    %1888 = vmatpush1.bf16.msra.mxu0 %v1276
    %1889 = vmatprep.subr.bf16.mxu0 %v1281
    %1890 = vmatpush1.bf16.msra.mxu0 %v1280
    %1891 = vmatprep.subr.bf16.mxu0 %v1285
    %1892 = vmatpush1.bf16.msra.mxu0 %v1284
    %1893 = vmatprep.subr.bf16.mxu0 %v1289
    %1894 = vmatpush1.bf16.msra.mxu0 %v1288
    %1895 = vmatprep.subr.bf16.mxu0 %v1293
    %1896 = vmatpush1.bf16.msra.mxu0 %v1292
    %1897 = vmatprep.mubr.bf16.mxu0 %v77
    %1898 = vmatmul.mubr.bf16.gmra.mrb[0].mxu0 %v76
    %v1899 = vpop.f32.mrb[0].mxu0
    %v1900 = vadd.f32 %v1859, %v1899
    %v1901 = vpop.f32.mrb[0].mxu0
    %v1902 = vadd.f32 %v1861, %v1901
    %v1903 = vpop.f32.mrb[0].mxu0
    %v1904 = vpop.f32.mrb[0].mxu0
    %1905 = vdwg.mxu0
    %1906 = vmatprep.subr.bf16.mxu0 %v1297
    %1907 = vmatpush1.bf16.msra.mxu0 %v1296
    %1908 = vmatprep.subr.bf16.mxu0 %v1301
    %1909 = vmatpush1.bf16.msra.mxu0 %v1300
    %1910 = vmatprep.subr.bf16.mxu0 %v1305
    %1911 = vmatpush1.bf16.msra.mxu0 %v1304
    %1912 = vmatprep.subr.bf16.mxu0 %v1309
    %1913 = vmatpush1.bf16.msra.mxu0 %v1308
    %1914 = vmatprep.subr.bf16.mxu0 %v1313
    %1915 = vmatpush1.bf16.msra.mxu0 %v1312
    %1916 = vmatprep.subr.bf16.mxu0 %v1317
    %1917 = vmatpush1.bf16.msra.mxu0 %v1316
    %1918 = vmatprep.subr.bf16.mxu0 %v1321
    %1919 = vmatpush1.bf16.msra.mxu0 %v1320
    %1920 = vmatprep.subr.bf16.mxu0 %v1325
    %1921 = vmatpush1.bf16.msra.mxu0 %v1324
    %1922 = vmatprep.subr.bf16.mxu0 %v1329
    %1923 = vmatpush1.bf16.msra.mxu0 %v1328
    %1924 = vmatprep.subr.bf16.mxu0 %v1333
    %1925 = vmatpush1.bf16.msra.mxu0 %v1332
    %1926 = vmatprep.subr.bf16.mxu0 %v1337
    %1927 = vmatpush1.bf16.msra.mxu0 %v1336
    %1928 = vmatprep.subr.bf16.mxu0 %v1341
    %1929 = vmatpush1.bf16.msra.mxu0 %v1340
    %1930 = vmatprep.subr.bf16.mxu0 %v1345
    %1931 = vmatpush1.bf16.msra.mxu0 %v1344
    %1932 = vmatprep.subr.bf16.mxu0 %v1349
    %1933 = vmatpush1.bf16.msra.mxu0 %v1348
    %1934 = vmatprep.subr.bf16.mxu0 %v1617
    %1935 = vmatpush1.bf16.msra.mxu0 %v1614
    %1936 = vmatprep.subr.bf16.mxu0 0
    %1937 = vmatpush1.bf16.msra.mxu0 0
    %1938 = vmatprep.mubr.bf16.mxu0 %v1604
    %1939 = vmatmul.mubr.bf16.gmra.mrb[0].mxu0 %v78
    %v1940 = vpop.f32.mrb[0].mxu0
    %v1941 = vadd.f32 %v1900, %v1940
    %v1942 = vpop.f32.mrb[0].mxu0
    %v1943 = vadd.f32 %v1902, %v1942
    %v1944 = vpop.f32.mrb[0].mxu0
    %v1945 = vpop.f32.mrb[0].mxu0
    %1946 = vdwg.mxu0
    %v1947 = vmax.f32 %v1777, 0.0
    %v1948 = vmax.f32 %v1779, 0.0
    %v1949 = vmax.f32 %v1941, 0.0
    %v1950 = vmax.f32 %v1943, 0.0
    %v1951 = vpack.c.bf16 %v1947, %v1947
    %v1952 = vpack.c.bf16 %v1948, %v1948
    %v1953 = vpack.c.bf16 %v1949, %v1949
    %v1954 = vpack.c.bf16 %v1950, %v1950
    %v1955 = vld [vmem:[#allocation7] sm:$0xf]
    %v1956 = vld [vmem:[#allocation7 + $0x4] sm:$0xf]
    %v1957 = vld [vmem:[#allocation7 + $0x8] sm:$0xf]
    %v1958 = vld [vmem:[#allocation7 + $0xc] sm:$0xf]
    %v1959 = vld [vmem:[#allocation7 + $0x10] sm:$0xf]
    %v1960 = vld [vmem:[#allocation7 + $0x14] sm:$0xf]
    %v1961 = vld [vmem:[#allocation7 + $0x18] sm:$0xf]
    %v1962 = vld [vmem:[#allocation7 + $0x1c] sm:$0xf]
    %v1963 = vld [vmem:[#allocation7 + $0x20] sm:$0xf]
    %v1964 = vld [vmem:[#allocation7 + $0x24] sm:$0xf]
    %v1965 = vld [vmem:[#allocation7 + $0x28] sm:$0xf]
    %v1966 = vld [vmem:[#allocation7 + $0x2c] sm:$0xf]
    %v1967 = vld [vmem:[#allocation7 + $0x30] sm:$0xf]
    %v1968 = vld [vmem:[#allocation7 + $0x34] sm:$0xf]
    %v1969 = vld [vmem:[#allocation7 + $0x38] sm:$0xf]
    %v1970 = vld [vmem:[#allocation7 + $0x3c] sm:$0xf]
    %v1971 = vld [vmem:[#allocation7 + $0x40] sm:$0xf]
    %v1972 = vld [vmem:[#allocation7 + $0x44] sm:$0xf]
    %v1973 = vld [vmem:[#allocation7 + $0x48] sm:$0xf]
    %v1974 = vld [vmem:[#allocation7 + $0x4c] sm:$0xf]
    %v1975 = vld [vmem:[#allocation7 + $0x50] sm:$0xf]
    %v1976 = vld [vmem:[#allocation7 + $0x54] sm:$0xf]
    %v1977 = vld [vmem:[#allocation7 + $0x58] sm:$0xf]
    %v1978 = vld [vmem:[#allocation7 + $0x5c] sm:$0xf]
    %v1979 = vld [vmem:[#allocation7 + $0x60] sm:$0xf]
    %v1980 = vld [vmem:[#allocation7 + $0x64] sm:$0xf]
    %v1981 = vld [vmem:[#allocation7 + $0x68] sm:$0xf]
    %v1982 = vld [vmem:[#allocation7 + $0x6c] sm:$0xf]
    %v1983 = vld [vmem:[#allocation7 + $0x70] sm:$0xf]
    %v1984 = vld [vmem:[#allocation7 + $0x74] sm:$0xf]
    %v1985 = vld [vmem:[#allocation7 + $0x78] sm:$0xf]
    %v1986 = vld [vmem:[#allocation7 + $0x7c] sm:$0xf]
    %v1987 = vld [vmem:[#allocation7 + $0x80] sm:$0xf]
    %v1988 = vld [vmem:[#allocation7 + $0x84] sm:$0xf]
    %v1989 = vld [vmem:[#allocation7 + $0x88] sm:$0xf]
    %v1990 = vld [vmem:[#allocation7 + $0x8c] sm:$0xf]
    %v1991 = vld [vmem:[#allocation7 + $0x90] sm:$0xf]
    %v1992 = vld [vmem:[#allocation7 + $0x94] sm:$0xf]
    %v1993 = vld [vmem:[#allocation7 + $0x98] sm:$0xf]
    %v1994 = vld [vmem:[#allocation7 + $0x9c] sm:$0xf]
    %v1995 = vld [vmem:[#allocation7 + $0xa0] sm:$0xf]
    %v1996 = vld [vmem:[#allocation7 + $0xa4] sm:$0xf]
    %v1997 = vld [vmem:[#allocation7 + $0xa8] sm:$0xf]
    %v1998 = vld [vmem:[#allocation7 + $0xac] sm:$0xf]
    %v1999 = vld [vmem:[#allocation7 + $0xb0] sm:$0xf]
    %v2000 = vld [vmem:[#allocation7 + $0xb4] sm:$0xf]
    %v2001 = vld [vmem:[#allocation7 + $0xb8] sm:$0xf]
    %v2002 = vld [vmem:[#allocation7 + $0xbc] sm:$0xf]
    %v2003 = vld [vmem:[#allocation7 + $0xc0] sm:$0xf]
    %v2004 = vld [vmem:[#allocation7 + $0xc4] sm:$0xf]
    %v2005 = vld [vmem:[#allocation7 + $0xc8] sm:$0xf]
    %v2006 = vld [vmem:[#allocation7 + $0xcc] sm:$0xf]
    %v2007 = vld [vmem:[#allocation7 + $0xd0] sm:$0xf]
    %v2008 = vld [vmem:[#allocation7 + $0xd4] sm:$0xf]
    %v2009 = vld [vmem:[#allocation7 + $0xd8] sm:$0xf]
    %v2010 = vld [vmem:[#allocation7 + $0xdc] sm:$0xf]
    %v2011 = vld [vmem:[#allocation7 + $0xe0] sm:$0xf]
    %v2012 = vld [vmem:[#allocation7 + $0xe4] sm:$0xf]
    %v2013 = vld [vmem:[#allocation7 + $0xe8] sm:$0xf]
    %v2014 = vld [vmem:[#allocation7 + $0xec] sm:$0xf]
    %v2015 = vld [vmem:[#allocation7 + $0xf0] sm:$0xf]
    %v2016 = vld [vmem:[#allocation7 + $0xf4] sm:$0xf]
    %v2017 = vld [vmem:[#allocation7 + $0xf8] sm:$0xf]
    %v2018 = vld [vmem:[#allocation7 + $0xfc] sm:$0xf]
    %v2019 = vld [vmem:[%s4] sm:$0x1]
    %v2021 = vlaneseq
    %v2022 = vshrl.u32 %v2021, 7
    %v2023 = vsub.s32 0, %v2022
    %v2024 = vrot.slane %v2019, %v2023
    %v2090 = vunpack.c.l.b16 %v1955
    %v2091 = vunpack.c.l.b16 %v1956
    %v2092 = vunpack.c.l.b16 %v1957
    %v2093 = vunpack.c.l.b16 %v1958
    %v2094 = vunpack.c.l.b16 %v1959
    %v2095 = vunpack.c.l.b16 %v1960
    %v2096 = vunpack.c.l.b16 %v1961
    %v2097 = vunpack.c.l.b16 %v1962
    %v2098 = vunpack.c.l.b16 %v1963
    %v2099 = vunpack.c.l.b16 %v1964
    %v2100 = vunpack.c.l.b16 %v1965
    %v2101 = vunpack.c.l.b16 %v1966
    %v2102 = vunpack.c.l.b16 %v1967
    %v2103 = vunpack.c.l.b16 %v1968
    %v2104 = vunpack.c.l.b16 %v1969
    %v2105 = vunpack.c.l.b16 %v1970
    %v2106 = vunpack.c.l.b16 %v1971
    %v2107 = vunpack.c.l.b16 %v1972
    %v2108 = vunpack.c.l.b16 %v1973
    %v2109 = vunpack.c.l.b16 %v1974
    %v2110 = vunpack.c.l.b16 %v1975
    %v2111 = vunpack.c.l.b16 %v1976
    %v2112 = vunpack.c.l.b16 %v1977
    %v2113 = vunpack.c.l.b16 %v1978
    %v2114 = vunpack.c.l.b16 %v1979
    %v2115 = vunpack.c.l.b16 %v1980
    %v2116 = vunpack.c.l.b16 %v1981
    %v2117 = vunpack.c.l.b16 %v1982
    %v2118 = vunpack.c.l.b16 %v1983
    %v2119 = vunpack.c.l.b16 %v1984
    %v2120 = vunpack.c.l.b16 %v1985
    %v2121 = vunpack.c.l.b16 %v1986
    %v2122 = vunpack.c.l.b16 %v1987
    %v2123 = vunpack.c.l.b16 %v1988
    %v2124 = vunpack.c.l.b16 %v1989
    %v2125 = vunpack.c.l.b16 %v1990
    %v2126 = vunpack.c.l.b16 %v1991
    %v2127 = vunpack.c.l.b16 %v1992
    %v2128 = vunpack.c.l.b16 %v1993
    %v2129 = vunpack.c.l.b16 %v1994
    %v2130 = vunpack.c.l.b16 %v1995
    %v2131 = vunpack.c.l.b16 %v1996
    %v2132 = vunpack.c.l.b16 %v1997
    %v2133 = vunpack.c.l.b16 %v1998
    %v2134 = vunpack.c.l.b16 %v1999
    %v2135 = vunpack.c.l.b16 %v2000
    %v2136 = vunpack.c.l.b16 %v2001
    %v2137 = vunpack.c.l.b16 %v2002
    %v2138 = vunpack.c.l.b16 %v2003
    %v2139 = vunpack.c.l.b16 %v2004
    %v2140 = vunpack.c.l.b16 %v2005
    %v2141 = vunpack.c.l.b16 %v2006
    %v2142 = vunpack.c.l.b16 %v2007
    %v2143 = vunpack.c.l.b16 %v2008
    %v2144 = vunpack.c.l.b16 %v2009
    %v2145 = vunpack.c.l.b16 %v2010
    %v2146 = vunpack.c.l.b16 %v2011
    %v2147 = vunpack.c.l.b16 %v2012
    %v2148 = vunpack.c.l.b16 %v2013
    %v2149 = vunpack.c.l.b16 %v2014
    %v2150 = vunpack.c.l.b16 %v2015
    %v2151 = vunpack.c.l.b16 %v2016
    %v2152 = vunpack.c.l.b16 %v2017
    %v2153 = vunpack.c.l.b16 %v2018
    %v2154 = vpack.c.b16 %v2091, %v2090
    %v2155 = vpack.c.b16 %v2093, %v2092
    %v2156 = vpack.c.b16 %v2095, %v2094
    %v2157 = vpack.c.b16 %v2097, %v2096
    %v2158 = vpack.c.b16 %v2099, %v2098
    %v2159 = vpack.c.b16 %v2101, %v2100
    %v2160 = vpack.c.b16 %v2103, %v2102
    %v2161 = vpack.c.b16 %v2105, %v2104
    %v2162 = vpack.c.b16 %v2107, %v2106
    %v2163 = vpack.c.b16 %v2109, %v2108
    %v2164 = vpack.c.b16 %v2111, %v2110
    %v2165 = vpack.c.b16 %v2113, %v2112
    %v2166 = vpack.c.b16 %v2115, %v2114
    %v2167 = vpack.c.b16 %v2117, %v2116
    %v2168 = vpack.c.b16 %v2119, %v2118
    %v2169 = vpack.c.b16 %v2121, %v2120
    %v2170 = vpack.c.b16 %v2123, %v2122
    %v2171 = vpack.c.b16 %v2125, %v2124
    %v2172 = vpack.c.b16 %v2127, %v2126
    %v2173 = vpack.c.b16 %v2129, %v2128
    %v2174 = vpack.c.b16 %v2131, %v2130
    %v2175 = vpack.c.b16 %v2133, %v2132
    %v2176 = vpack.c.b16 %v2135, %v2134
    %v2177 = vpack.c.b16 %v2137, %v2136
    %v2178 = vpack.c.b16 %v2139, %v2138
    %v2179 = vpack.c.b16 %v2141, %v2140
    %v2180 = vpack.c.b16 %v2143, %v2142
    %v2181 = vpack.c.b16 %v2145, %v2144
    %v2182 = vpack.c.b16 %v2147, %v2146
    %v2183 = vpack.c.b16 %v2149, %v2148
    %v2184 = vpack.c.b16 %v2151, %v2150
    %v2185 = vpack.c.b16 %v2153, %v2152
    %2218 = vmatprep.subr.bf16.mxu0 0
    %2219 = vmatpush1.bf16.msra.mxu0 %v2154
    %2220 = vmatprep.subr.bf16.mxu0 0
    %2221 = vmatpush1.bf16.msra.mxu0 %v2155
    %2222 = vmatprep.subr.bf16.mxu0 0
    %2223 = vmatpush1.bf16.msra.mxu0 %v2156
    %2224 = vmatprep.subr.bf16.mxu0 0
    %2225 = vmatpush1.bf16.msra.mxu0 %v2157
    %2226 = vmatprep.subr.bf16.mxu0 0
    %2227 = vmatpush1.bf16.msra.mxu0 %v2158
    %2228 = vmatprep.subr.bf16.mxu0 0
    %2229 = vmatpush1.bf16.msra.mxu0 %v2159
    %2230 = vmatprep.subr.bf16.mxu0 0
    %2231 = vmatpush1.bf16.msra.mxu0 %v2160
    %2232 = vmatprep.subr.bf16.mxu0 0
    %2233 = vmatpush1.bf16.msra.mxu0 %v2161
    %2234 = vmatprep.subr.bf16.mxu0 0
    %2235 = vmatpush1.bf16.msra.mxu0 %v2162
    %2236 = vmatprep.subr.bf16.mxu0 0
    %2237 = vmatpush1.bf16.msra.mxu0 %v2163
    %2238 = vmatprep.subr.bf16.mxu0 0
    %2239 = vmatpush1.bf16.msra.mxu0 %v2164
    %2240 = vmatprep.subr.bf16.mxu0 0
    %2241 = vmatpush1.bf16.msra.mxu0 %v2165
    %2242 = vmatprep.subr.bf16.mxu0 0
    %2243 = vmatpush1.bf16.msra.mxu0 %v2166
    %2244 = vmatprep.subr.bf16.mxu0 0
    %2245 = vmatpush1.bf16.msra.mxu0 %v2167
    %2246 = vmatprep.subr.bf16.mxu0 0
    %2247 = vmatpush1.bf16.msra.mxu0 %v2168
    %2248 = vmatprep.subr.bf16.mxu0 0
    %2249 = vmatpush1.bf16.msra.mxu0 %v2169
    %2250 = vmatprep.mubr.bf16.mxu0 %v1952
    %2251 = vmatmul.mubr.bf16.gmra.mrb[0].mxu0 %v1951
    %v2252 = vpop.f32.mrb[0].mxu0
    %v2253 = vadd.f32 %v2024, %v2252
    %v2254 = vpop.f32.mrb[0].mxu0
    %v2255 = vpop.f32.mrb[0].mxu0
    %v2256 = vpop.f32.mrb[0].mxu0
    %2257 = vdwg.mxu0
    %2258 = vmatprep.subr.bf16.mxu0 0
    %2259 = vmatpush1.bf16.msra.mxu0 %v2170
    %2260 = vmatprep.subr.bf16.mxu0 0
    %2261 = vmatpush1.bf16.msra.mxu0 %v2171
    %2262 = vmatprep.subr.bf16.mxu0 0
    %2263 = vmatpush1.bf16.msra.mxu0 %v2172
    %2264 = vmatprep.subr.bf16.mxu0 0
    %2265 = vmatpush1.bf16.msra.mxu0 %v2173
    %2266 = vmatprep.subr.bf16.mxu0 0
    %2267 = vmatpush1.bf16.msra.mxu0 %v2174
    %2268 = vmatprep.subr.bf16.mxu0 0
    %2269 = vmatpush1.bf16.msra.mxu0 %v2175
    %2270 = vmatprep.subr.bf16.mxu0 0
    %2271 = vmatpush1.bf16.msra.mxu0 %v2176
    %2272 = vmatprep.subr.bf16.mxu0 0
    %2273 = vmatpush1.bf16.msra.mxu0 %v2177
    %2274 = vmatprep.subr.bf16.mxu0 0
    %2275 = vmatpush1.bf16.msra.mxu0 %v2178
    %2276 = vmatprep.subr.bf16.mxu0 0
    %2277 = vmatpush1.bf16.msra.mxu0 %v2179
    %2278 = vmatprep.subr.bf16.mxu0 0
    %2279 = vmatpush1.bf16.msra.mxu0 %v2180
    %2280 = vmatprep.subr.bf16.mxu0 0
    %2281 = vmatpush1.bf16.msra.mxu0 %v2181
    %2282 = vmatprep.subr.bf16.mxu0 0
    %2283 = vmatpush1.bf16.msra.mxu0 %v2182
    %2284 = vmatprep.subr.bf16.mxu0 0
    %2285 = vmatpush1.bf16.msra.mxu0 %v2183
    %2286 = vmatprep.subr.bf16.mxu0 0
    %2287 = vmatpush1.bf16.msra.mxu0 %v2184
    %2288 = vmatprep.subr.bf16.mxu0 0
    %2289 = vmatpush1.bf16.msra.mxu0 %v2185
    %2290 = vmatprep.mubr.bf16.mxu0 %v1954
    %2291 = vmatmul.mubr.bf16.gmra.mrb[0].mxu0 %v1953
    %v2292 = vpop.f32.mrb[0].mxu0
    %v2293 = vadd.f32 %v2253, %v2292
    %v2294 = vpop.f32.mrb[0].mxu0
    %v2295 = vpop.f32.mrb[0].mxu0
    %v2296 = vpop.f32.mrb[0].mxu0
    %2297 = vdwg.mxu0
    %v2298 = vmax.f32 %v2293, 0.0
    %v2299 = vld [vmem:[%s5] sm:$0x1]
    %v2301 = vlaneseq
    %v2302 = vshrl.u32 %v2301, 7
    %v2303 = vsub.s32 0, %v2302
    %v2304 = vrot.slane %v2299, %v2303
    %v2306 = vadd.f32 %v2298, %v2304
    %2307 = vmax.xlane.f32.xlu0 %v2306
    %v2308 = vpop.xlane.xlu0 %2307
    %v2309 = vsub.f32 %v2306, %v2308
    %v2310 = vmul.f32 %v2309, 1.442695
    %v2311 = vpow.pop %v2310
    %2312 = vadd.xlane.f32.xlu0 %v2311
    %v2313 = vpop.xlane.xlu0 %2312
    %v2314 = vrcp.pop %v2313
    %v2315 = vmul.f32 %v2311, %v2314
    %2316 = vst [vmem:[#allocation8] sm:$0xff] %v2315
    // Predicated region
    $region38: #{tpu_custom_call.1} parent=1 // pred_check
      _
    $region39: #{tpu_custom_call.1} parent=1 // pred_check_branch
      %2318 = sbr.rel (0) target = $region41
    $region40: #{tpu_custom_call.1} parent=1 // pred_region
      %s2320 = ssub.s32 128, 128
      %2321 = vsyncadd [#allocation4], %s2320
      %s2323 = sshll.u32 [#allocation8], 4
      %s2324 = int_to_ptr.vmem [resolvable:$true] %s2323
      %2326 = dma.vmem_to_hbm [thread:$0]  %s2324, 128, %s6, [#allocation4]
    $region41: #{tpu_custom_call.1} parent=1 // pred_fallthru
      _
    // Predicated region
    $region42: #{tpu_custom_call.1} parent=1 // pred_check
      _
    $region43: #{tpu_custom_call.1} parent=1 // pred_check_branch
      %2328 = sbr.rel (0) target = $region45
    $region44: #{tpu_custom_call.1} parent=1 // pred_region
      %2329 = dma.done [#allocation4], 128
    $region45: #{tpu_custom_call.1} parent=1 // pred_fallthru
      _
    %2330 = vsyncpa [#allocation3], 1
    %2331 = vsyncpa [#allocation6], 1
    %2332 = vsyncpa [#allocation4], 1

</llo_original>
